<compile_context>
chip_gen: v6e
topology: v6e:2x2x1
jax: 0.10.0
libtpu: 0.0.40
codegen_flags: <defaults>
</compile_context>

<pallas_src>
import jax
import jax.numpy as jnp
from jax.experimental import pallas as pl
from jax.experimental.pallas import tpu as pltpu


def _cdiv(a, b):
    return -(-a // b)


# ----------------------------------------------------------------------------
# Kernel
# ----------------------------------------------------------------------------
def _primary_imn_kernel(
    enc_ref,    # (Bt, T, H)   encoder_out block
    pos_ref,    # (Bt, T, P)   position block (squeeze_embedding-masked)
    pol_ref,    # (Bt, T, C)   polar block
    asp_ref,    # (Bt, 1, W)   aspect block
    venc_ref,   # (2, 1, H)    [v_hp_enc ; v_hap_enc]  (folded query paths)
    vpol_ref,   # (1, 1, C)    v_hp_pol
    vpos_ref,   # (1, 1, P)    v_hap_pos
    uasp_ref,   # (1, 1, W)    W_aspect_u @ v_hap_asp
    c_ref,      # (1, 1, 2)    [c_hp, c_hap] folded bias constants
    d1sp_ref,   # (C, H)   dense[0] rows for sp
    d1sa_ref,   # (H, H)   dense[0] rows for sa
    d1mx_ref,   # (H, H)   dense[0] rows for s_max
    d1b_ref,    # (1, H)
    d2w_ref,    # (H, NP)
    d2b_ref,    # (1, NP)
    out_ref,    # (Bt, NP)
):
    f32 = jnp.float32
    enc = enc_ref[...]            # (Bt, T, H)
    pos = pos_ref[...]            # (Bt, T, P)
    pol = pol_ref[...]            # (Bt, T, C)
    asp = asp_ref[...]            # (Bt, 1, W)

    venc = venc_ref[...]          # (2, 1, H)
    c = c_ref[...]                # (1, 1, 2)

    def dot_last(x, v):           # lane-dim dot product, keepdims -> (..., 1)
        return jnp.sum(x * v, axis=-1, keepdims=True)

    # Folded bi-linear attention logits (query side precomputed in wrapper):
    #   logit_hp[b,t]  = enc[b,t]·v_hp_enc  + pol[b,t]·v_hp_pol  + c_hp
    #   logit_hap[b,t] = enc[b,t]·v_hap_enc + pos[b,t]·v_hap_pos
    #                    + aspect[b]·u_asp + c_hap
    lg_hp = dot_last(enc, venc[0:1]) + dot_last(pol, vpol_ref[...]) + c[:, :, 0:1]
    lg_hap = (dot_last(enc, venc[1:2]) + dot_last(pos, vpos_ref[...])
              + dot_last(asp, uasp_ref[...]) + c[:, :, 1:2])       # (Bt, T, 1)

    def softmax_t(x):             # softmax over the time (sublane) axis
        m = jnp.max(x, axis=1, keepdims=True)
        e = jnp.exp(x - m)
        return e / jnp.sum(e, axis=1, keepdims=True)

    sc_hp = softmax_t(lg_hp)      # (Bt, T, 1)
    sc_hap = softmax_t(lg_hap)    # (Bt, T, 1)

    # Attention-weighted sums + max-pool over time: VPU multiply and
    # cross-sublane reduce (no per-batch tiny MXU calls).
    sp = jnp.sum(sc_hp * pol, axis=1)        # (Bt, C)
    sa = jnp.sum(sc_hap * enc, axis=1)       # (Bt, H)
    s_max = jnp.max(enc, axis=1)             # (Bt, H)

    def mm(a, b):
        return jnp.dot(a, b, preferred_element_type=f32)

    # dense: Linear(2H+C, H) as split-weight matmuls (s = cat(sp, sa, s_max)
    # never materialized), Dropout = identity at inference, Tanh, Linear.
    h = jnp.tanh(mm(sp, d1sp_ref[...]) + mm(sa, d1sa_ref[...])
                 + mm(s_max, d1mx_ref[...]) + d1b_ref[...])        # (Bt, H)
    out = mm(h, d2w_ref[...]) + d2b_ref[...]                       # (Bt, NP)
    out_ref[...] = out.astype(out_ref.dtype)


# ----------------------------------------------------------------------------
# Parameters (PyTorch-equivalent layout: weights stored as (in, out))
# ----------------------------------------------------------------------------
def init_params(key, hidden_dim, word_embed_dim, position_dim, num_polar,
                polar_dim=100):
    H, W, P, NP, C = hidden_dim, word_embed_dim, position_dim, num_polar, polar_dim
    Ehp, Ehap = H + C, W + H + P
    keys = iter(jax.random.split(key, 20))

    def uni(k, fan_in, shape):
        b = 1.0 / (fan_in ** 0.5)
        return jax.random.uniform(k, shape, jnp.float32, -b, b)

    p = {}
    p["wau"] = uni(next(keys), W, (W, W))
    p["bau"] = uni(next(keys), W, (1, W))
    p["hp_q"] = uni(next(keys), Ehp, (1, Ehp))
    p["hp_wq"] = uni(next(keys), Ehp, (Ehp, Ehp))
    p["hp_bq"] = uni(next(keys), Ehp, (1, Ehp))
    p["hp_wk"] = uni(next(keys), Ehp, (Ehp, Ehp))   # rows: [enc(H) | polar(C)]
    p["hp_bk"] = uni(next(keys), Ehp, (1, Ehp))
    p["hp_bil"] = uni(next(keys), Ehp, (Ehp, Ehp))
    p["hap_q"] = uni(next(keys), Ehap, (1, Ehap))
    p["hap_wq"] = uni(next(keys), Ehap, (Ehap, Ehap))
    p["hap_bq"] = uni(next(keys), Ehap, (1, Ehap))
    p["hap_wk"] = uni(next(keys), Ehap, (Ehap, Ehap))  # rows: [enc(H)|pos(P)|asp(W)]
    p["hap_bk"] = uni(next(keys), Ehap, (1, Ehap))
    p["hap_bil"] = uni(next(keys), Ehap, (Ehap, Ehap))
    d_in = 2 * H + C
    p["d1_w"] = uni(next(keys), d_in, (d_in, H))       # rows: [sp(C)|sa(H)|s_max(H)]
    p["d1_b"] = uni(next(keys), d_in, (1, H))
    p["d2_w"] = uni(next(keys), H, (H, NP))
    p["d2_b"] = uni(next(keys), H, (1, NP))
    return p


def fold_params(p, hidden_dim, word_embed_dim, position_dim, polar_dim=100):
    """Fold the parameter-only query path of both attentions (and aspect_u)."""
    H, W, P, C = hidden_dim, word_embed_dim, position_dim, polar_dim
    f32 = jnp.float32
    # attention_hp: logits = kx @ qw.T,  kx = [enc|polar] @ W_k + b_k
    qw_hp = (p["hp_q"] @ p["hp_wq"] + p["hp_bq"]) @ p["hp_bil"]      # (1, H+C)
    v_hp = p["hp_wk"] @ qw_hp.T                                      # (H+C, 1)
    c_hp = (p["hp_bk"] @ qw_hp.T)[0, 0]
    # attention_hap over [enc | position | aspect_u]
    qw_hap = (p["hap_q"] @ p["hap_wq"] + p["hap_bq"]) @ p["hap_bil"]  # (1, W+H+P)
    v_hap = p["hap_wk"] @ qw_hap.T                                    # (H+P+W, 1)
    v_hap_asp = v_hap[H + P:]                                         # (W, 1)
    # aspect_u(aspect) only enters via aspect_u @ v_hap_asp -> fold it too.
    u_asp = p["wau"] @ v_hap_asp                                      # (W, 1)
    c_hap = (p["hap_bk"] @ qw_hap.T + p["bau"] @ v_hap_asp)[0, 0]
    return {
        "v_enc": jnp.stack([v_hp[:H, 0], v_hap[:H, 0]])[:, None, :].astype(f32),
        "v_pol": v_hp[H:, 0].reshape(1, 1, C).astype(f32),
        "v_pos": v_hap[H:H + P, 0].reshape(1, 1, P).astype(f32),
        "u_asp": u_asp[:, 0].reshape(1, 1, W).astype(f32),
        "c": jnp.stack([c_hp, c_hap]).reshape(1, 1, 2).astype(f32),
        "d1_sp": p["d1_w"][:C],
        "d1_sa": p["d1_w"][C:C + H],
        "d1_mx": p["d1_w"][C + H:],
        "d1_b": p["d1_b"],
        "d2_w": p["d2_w"],
        "d2_b": p["d2_b"],
    }


_PARAM_KEYS = ("v_enc", "v_pol", "v_pos", "u_asp", "c",
               "d1_sp", "d1_sa", "d1_mx", "d1_b", "d2_w", "d2_b")


# ----------------------------------------------------------------------------
# Wrapper
# ----------------------------------------------------------------------------
def primary_imn_forward(encoder_out, position, polar, aspect, len_x, folded,
                        *, block_b=None):
    B, T, H = encoder_out.shape
    P = position.shape[-1]
    C = polar.shape[-1]
    W = aspect.shape[-1]
    NP = folded["d2_w"].shape[-1]

    # squeeze_embedding(position, len_x): truncate to max(len_x) and zero the
    # padded timesteps.  T is taken from encoder_out's static shape (the
    # reference's torch.cat requires T == max(len_x)), avoiding a device->host
    # sync / recompile per distinct max length.
    # TODO(synk): encoder_out / polar padded timesteps are not masked, matching
    # the reference NoQueryAttention which does not mask padding either.
    position = position[:, :T]
    valid = (jnp.arange(T)[None, :] < len_x[:, None]).astype(position.dtype)
    position = position * valid[:, :, None]

    if block_b is None:
        # >=2 grid steps when B allows (feeds both TensorCores on v7x), blocks
        # padded to a sublane multiple, capped at 128 rows per step.
        block_b = max(8, min(128, 8 * _cdiv(_cdiv(B, 2), 8)))
    grid_b = _cdiv(B, block_b)
    b_pad = grid_b * block_b
    if b_pad != B:
        pad = ((0, b_pad - B), (0, 0), (0, 0))
        encoder_out = jnp.pad(encoder_out, pad)
        position = jnp.pad(position, pad)
        polar = jnp.pad(polar, pad)
        aspect = jnp.pad(aspect, pad)

    param_arrays = [folded[k] for k in _PARAM_KEYS]
    in_specs = [
        pl.BlockSpec((block_b, T, H), lambda i: (i, 0, 0)),
        pl.BlockSpec((block_b, T, P), lambda i: (i, 0, 0)),
        pl.BlockSpec((block_b, T, C), lambda i: (i, 0, 0)),
        pl.BlockSpec((block_b, 1, W), lambda i: (i, 0, 0)),
    ] + [pl.BlockSpec(a.shape, lambda i, nd=a.ndim: (0,) * nd)
         for a in param_arrays]

    out = pl.pallas_call(
        _primary_imn_kernel,
        out_shape=jax.ShapeDtypeStruct((b_pad, NP), jnp.float32),
        grid=(grid_b,),
        in_specs=in_specs,
        out_specs=pl.BlockSpec((block_b, NP), lambda i: (i, 0)),
        compiler_params=pltpu.CompilerParams(
            dimension_semantics=("parallel",)),
    )(encoder_out, position, polar, aspect, *param_arrays)
    return out[:B]


# ----------------------------------------------------------------------------
# Pure-JAX reference (literal transliteration of the PyTorch forward)
# ----------------------------------------------------------------------------
def primary_imn_reference(encoder_out, position, polar, aspect, len_x, p):
    B, T, _ = encoder_out.shape
    valid = (jnp.arange(T)[None, :] < len_x[:, None]).astype(position.dtype)
    position = position[:, :T] * valid[:, :, None]
    aspect_u = aspect @ p["wau"] + p["bau"]                              # (B,1,W)

    hp = jnp.concatenate([encoder_out, polar], axis=-1)
    kx = hp @ p["hp_wk"] + p["hp_bk"]
    qw = (p["hp_q"] @ p["hp_wq"] + p["hp_bq"]) @ p["hp_bil"]
    score = jax.nn.softmax(jnp.einsum("qe,bte->bqt", qw, kx), axis=-1)
    sp = jnp.einsum("bqt,btc->bqc", score, polar)[:, 0]

    hap = jnp.concatenate(
        [encoder_out, position,
         jnp.broadcast_to(aspect_u, (B, T, aspect_u.shape[-1]))], axis=-1)
    kx2 = hap @ p["hap_wk"] + p["hap_bk"]
    qw2 = (p["hap_q"] @ p["hap_wq"] + p["hap_bq"]) @ p["hap_bil"]
    score2 = jax.nn.softmax(jnp.einsum("qe,bte->bqt", qw2, kx2), axis=-1)
    sa = jnp.einsum("bqt,bth->bqh", score2, encoder_out)[:, 0]

    s_max = jnp.max(encoder_out, axis=1)
    s = jnp.concatenate([sp, sa, s_max], axis=-1)
    h = jnp.tanh(s @ p["d1_w"] + p["d1_b"])
    return h @ p["d2_w"] + p["d2_b"]


if __name__ == "__main__":
    B, T = 2, 8
    hidden_dim, word_embed_dim, position_dim, num_polar = 32, 32, 16, 3
    polar_dim = 100

    key = jax.random.PRNGKey(0)
    k1, k2, k3, k4, kp = jax.random.split(key, 5)
    encoder_out = jax.random.normal(k1, (B, T, hidden_dim), jnp.float32)
    position = jax.random.normal(k2, (B, T, position_dim), jnp.float32)
    polar = jax.random.normal(k3, (B, T, polar_dim), jnp.float32)
    aspect = jax.random.normal(k4, (B, 1, word_embed_dim), jnp.float32)
    len_x = jnp.array([T, T - 3], dtype=jnp.int32)

    params = init_params(kp, hidden_dim, word_embed_dim, position_dim,
                         num_polar, polar_dim)
    folded = fold_params(params, hidden_dim, word_embed_dim, position_dim,
                         polar_dim)

    fwd = jax.jit(primary_imn_forward)
    out = fwd(encoder_out, position, polar, aspect, len_x, folded)
    jax.block_until_ready(out)
    assert out.shape == (B, num_polar) and out.dtype == jnp.float32

    ref = primary_imn_reference(encoder_out, position, polar, aspect, len_x,
                                params)
    err = float(jnp.max(jnp.abs(out - ref)))
    assert err < 1e-3, f"kernel/reference mismatch: {err}"
    print("KERNEL_OK")
</pallas_src>

<mosaic_0001>
module attributes {stable_mosaic.version = 11 : i64} {
  func.func @_primary_imn_kernel(%arg0: i32, %arg1: memref<8x8x32xf32, #tpu.memory_space<vmem>>, %arg2: memref<8x8x16xf32, #tpu.memory_space<vmem>>, %arg3: memref<8x8x100xf32, #tpu.memory_space<vmem>>, %arg4: memref<8x1x32xf32, #tpu.memory_space<vmem>>, %arg5: memref<2x1x32xf32, #tpu.memory_space<vmem>>, %arg6: memref<1x1x100xf32, #tpu.memory_space<vmem>>, %arg7: memref<1x1x16xf32, #tpu.memory_space<vmem>>, %arg8: memref<1x1x32xf32, #tpu.memory_space<vmem>>, %arg9: memref<1x1x2xf32, #tpu.memory_space<vmem>>, %arg10: memref<100x32xf32, #tpu.memory_space<vmem>>, %arg11: memref<32x32xf32, #tpu.memory_space<vmem>>, %arg12: memref<32x32xf32, #tpu.memory_space<vmem>>, %arg13: memref<1x32xf32, #tpu.memory_space<vmem>>, %arg14: memref<32x3xf32, #tpu.memory_space<vmem>>, %arg15: memref<1x3xf32, #tpu.memory_space<vmem>>, %arg16: memref<8x3xf32, #tpu.memory_space<vmem>>) attributes {dimension_semantics = [#tpu.dimension_semantics<parallel>], iteration_bounds = array<i64: 1>, scalar_prefetch = 0 : i64, scratch_operands = 0 : i64, tpu.core_type = #tpu.core_type<tc>, window_params = [{transform_indices = @transform_0, window_bounds = array<i64: 8, 8, 32>}, {transform_indices = @transform_1, window_bounds = array<i64: 8, 8, 16>}, {transform_indices = @transform_2, window_bounds = array<i64: 8, 8, 100>}, {transform_indices = @transform_3, window_bounds = array<i64: 8, 1, 32>}, {pipeline_mode = #tpu.pipeline_mode<synchronous>, transform_indices = @transform_4, window_bounds = array<i64: 2, 1, 32>}, {pipeline_mode = #tpu.pipeline_mode<synchronous>, transform_indices = @transform_5, window_bounds = array<i64: 1, 1, 100>}, {pipeline_mode = #tpu.pipeline_mode<synchronous>, transform_indices = @transform_6, window_bounds = array<i64: 1, 1, 16>}, {pipeline_mode = #tpu.pipeline_mode<synchronous>, transform_indices = @transform_7, window_bounds = array<i64: 1, 1, 32>}, {pipeline_mode = #tpu.pipeline_mode<synchronous>, transform_indices = @transform_8, window_bounds = array<i64: 1, 1, 2>}, {pipeline_mode = #tpu.pipeline_mode<synchronous>, transform_indices = @transform_9, window_bounds = array<i64: 100, 32>}, {pipeline_mode = #tpu.pipeline_mode<synchronous>, transform_indices = @transform_10, window_bounds = array<i64: 32, 32>}, {pipeline_mode = #tpu.pipeline_mode<synchronous>, transform_indices = @transform_11, window_bounds = array<i64: 32, 32>}, {pipeline_mode = #tpu.pipeline_mode<synchronous>, transform_indices = @transform_12, window_bounds = array<i64: 1, 32>}, {pipeline_mode = #tpu.pipeline_mode<synchronous>, transform_indices = @transform_13, window_bounds = array<i64: 32, 3>}, {pipeline_mode = #tpu.pipeline_mode<synchronous>, transform_indices = @transform_14, window_bounds = array<i64: 1, 3>}, {transform_indices = @transform_15, window_bounds = array<i64: 8, 3>}]} {
    %c0 = arith.constant 0 : index
    %c0_0 = arith.constant 0 : index
    %c0_1 = arith.constant 0 : index
    %0 = vector.load %arg1[%c0, %c0_0, %c0_1] : memref<8x8x32xf32, #tpu.memory_space<vmem>>, vector<8x8x32xf32>
    %c0_2 = arith.constant 0 : index
    %c0_3 = arith.constant 0 : index
    %c0_4 = arith.constant 0 : index
    %1 = vector.load %arg2[%c0_2, %c0_3, %c0_4] : memref<8x8x16xf32, #tpu.memory_space<vmem>>, vector<8x8x16xf32>
    %c0_5 = arith.constant 0 : index
    %c0_6 = arith.constant 0 : index
    %c0_7 = arith.constant 0 : index
    %2 = vector.load %arg3[%c0_5, %c0_6, %c0_7] : memref<8x8x100xf32, #tpu.memory_space<vmem>>, vector<8x8x100xf32>
    %c0_8 = arith.constant 0 : index
    %c0_9 = arith.constant 0 : index
    %c0_10 = arith.constant 0 : index
    %3 = vector.load %arg4[%c0_8, %c0_9, %c0_10] : memref<8x1x32xf32, #tpu.memory_space<vmem>>, vector<8x1x32xf32>
    %c0_11 = arith.constant 0 : index
    %c0_12 = arith.constant 0 : index
    %c0_13 = arith.constant 0 : index
    %4 = vector.load %arg5[%c0_11, %c0_12, %c0_13] : memref<2x1x32xf32, #tpu.memory_space<vmem>>, vector<2x1x32xf32>
    %c0_14 = arith.constant 0 : index
    %c0_15 = arith.constant 0 : index
    %c0_16 = arith.constant 0 : index
    %5 = vector.load %arg9[%c0_14, %c0_15, %c0_16] : memref<1x1x2xf32, #tpu.memory_space<vmem>>, vector<1x1x2xf32>
    %6 = vector.extract_strided_slice %4 {offsets = [0, 0, 0], sizes = [1, 1, 32], strides = [1, 1, 1]} : vector<2x1x32xf32> to vector<1x1x32xf32>
    %7 = vector.broadcast %6 : vector<1x1x32xf32> to vector<8x8x32xf32>
    %8 = arith.mulf %0, %7 : vector<8x8x32xf32>
    %cst = arith.constant dense<0.000000e+00> : vector<8x8xf32>
    %9 = vector.multi_reduction <add>, %8, %cst [2] : vector<8x8x32xf32> to vector<8x8xf32>
    %10 = vector.shape_cast %9 : vector<8x8xf32> to vector<8x8x1xf32>
    %c0_17 = arith.constant 0 : index
    %c0_18 = arith.constant 0 : index
    %c0_19 = arith.constant 0 : index
    %11 = vector.load %arg6[%c0_17, %c0_18, %c0_19] : memref<1x1x100xf32, #tpu.memory_space<vmem>>, vector<1x1x100xf32>
    %12 = vector.broadcast %11 : vector<1x1x100xf32> to vector<8x8x100xf32>
    %13 = arith.mulf %2, %12 : vector<8x8x100xf32>
    %cst_20 = arith.constant dense<0.000000e+00> : vector<8x8xf32>
    %14 = vector.multi_reduction <add>, %13, %cst_20 [2] : vector<8x8x100xf32> to vector<8x8xf32>
    %15 = vector.shape_cast %14 : vector<8x8xf32> to vector<8x8x1xf32>
    %16 = arith.addf %10, %15 : vector<8x8x1xf32>
    %17 = vector.extract_strided_slice %5 {offsets = [0, 0, 0], sizes = [1, 1, 1], strides = [1, 1, 1]} : vector<1x1x2xf32> to vector<1x1x1xf32>
    %18 = vector.broadcast %17 : vector<1x1x1xf32> to vector<8x8x1xf32>
    %19 = arith.addf %16, %18 : vector<8x8x1xf32>
    %20 = vector.extract_strided_slice %4 {offsets = [1, 0, 0], sizes = [1, 1, 32], strides = [1, 1, 1]} : vector<2x1x32xf32> to vector<1x1x32xf32>
    %21 = vector.broadcast %20 : vector<1x1x32xf32> to vector<8x8x32xf32>
    %22 = arith.mulf %0, %21 : vector<8x8x32xf32>
    %cst_21 = arith.constant dense<0.000000e+00> : vector<8x8xf32>
    %23 = vector.multi_reduction <add>, %22, %cst_21 [2] : vector<8x8x32xf32> to vector<8x8xf32>
    %24 = vector.shape_cast %23 : vector<8x8xf32> to vector<8x8x1xf32>
    %c0_22 = arith.constant 0 : index
    %c0_23 = arith.constant 0 : index
    %c0_24 = arith.constant 0 : index
    %25 = vector.load %arg7[%c0_22, %c0_23, %c0_24] : memref<1x1x16xf32, #tpu.memory_space<vmem>>, vector<1x1x16xf32>
    %26 = vector.broadcast %25 : vector<1x1x16xf32> to vector<8x8x16xf32>
    %27 = arith.mulf %1, %26 : vector<8x8x16xf32>
    %cst_25 = arith.constant dense<0.000000e+00> : vector<8x8xf32>
    %28 = vector.multi_reduction <add>, %27, %cst_25 [2] : vector<8x8x16xf32> to vector<8x8xf32>
    %29 = vector.shape_cast %28 : vector<8x8xf32> to vector<8x8x1xf32>
    %30 = arith.addf %24, %29 : vector<8x8x1xf32>
    %c0_26 = arith.constant 0 : index
    %c0_27 = arith.constant 0 : index
    %c0_28 = arith.constant 0 : index
    %31 = vector.load %arg8[%c0_26, %c0_27, %c0_28] : memref<1x1x32xf32, #tpu.memory_space<vmem>>, vector<1x1x32xf32>
    %32 = vector.broadcast %31 : vector<1x1x32xf32> to vector<8x1x32xf32>
    %33 = arith.mulf %3, %32 : vector<8x1x32xf32>
    %cst_29 = arith.constant dense<0.000000e+00> : vector<8x1xf32>
    %34 = vector.multi_reduction <add>, %33, %cst_29 [2] : vector<8x1x32xf32> to vector<8x1xf32>
    %35 = vector.shape_cast %34 : vector<8x1xf32> to vector<8x1x1xf32>
    %36 = vector.broadcast %35 : vector<8x1x1xf32> to vector<8x8x1xf32>
    %37 = arith.addf %30, %36 : vector<8x8x1xf32>
    %38 = vector.extract_strided_slice %5 {offsets = [0, 0, 1], sizes = [1, 1, 1], strides = [1, 1, 1]} : vector<1x1x2xf32> to vector<1x1x1xf32>
    %39 = vector.broadcast %38 : vector<1x1x1xf32> to vector<8x8x1xf32>
    %40 = arith.addf %37, %39 : vector<8x8x1xf32>
    %cst_30 = arith.constant dense<0xFF800000> : vector<8x1xf32>
    %41 = vector.multi_reduction <maximumf>, %19, %cst_30 [1] : vector<8x8x1xf32> to vector<8x1xf32>
    %42 = vector.shape_cast %41 : vector<8x1xf32> to vector<8x1x1xf32>
    %43 = vector.broadcast %42 : vector<8x1x1xf32> to vector<8x8x1xf32>
    %44 = arith.subf %19, %43 : vector<8x8x1xf32>
    %45 = math.exp %44 : vector<8x8x1xf32>
    %cst_31 = arith.constant dense<0.000000e+00> : vector<8x1xf32>
    %46 = vector.multi_reduction <add>, %45, %cst_31 [1] : vector<8x8x1xf32> to vector<8x1xf32>
    %47 = vector.shape_cast %46 : vector<8x1xf32> to vector<8x1x1xf32>
    %48 = vector.broadcast %47 : vector<8x1x1xf32> to vector<8x8x1xf32>
    %49 = arith.divf %45, %48 : vector<8x8x1xf32>
    %cst_32 = arith.constant dense<0xFF800000> : vector<8x1xf32>
    %50 = vector.multi_reduction <maximumf>, %40, %cst_32 [1] : vector<8x8x1xf32> to vector<8x1xf32>
    %51 = vector.shape_cast %50 : vector<8x1xf32> to vector<8x1x1xf32>
    %52 = vector.broadcast %51 : vector<8x1x1xf32> to vector<8x8x1xf32>
    %53 = arith.subf %40, %52 : vector<8x8x1xf32>
    %54 = math.exp %53 : vector<8x8x1xf32>
    %cst_33 = arith.constant dense<0.000000e+00> : vector<8x1xf32>
    %55 = vector.multi_reduction <add>, %54, %cst_33 [1] : vector<8x8x1xf32> to vector<8x1xf32>
    %56 = vector.shape_cast %55 : vector<8x1xf32> to vector<8x1x1xf32>
    %57 = vector.broadcast %56 : vector<8x1x1xf32> to vector<8x8x1xf32>
    %58 = arith.divf %54, %57 : vector<8x8x1xf32>
    %59 = vector.broadcast %49 : vector<8x8x1xf32> to vector<8x8x100xf32>
    %60 = arith.mulf %59, %2 : vector<8x8x100xf32>
    %cst_34 = arith.constant dense<0.000000e+00> : vector<8x100xf32>
    %61 = vector.multi_reduction <add>, %60, %cst_34 [1] : vector<8x8x100xf32> to vector<8x100xf32>
    %62 = vector.broadcast %58 : vector<8x8x1xf32> to vector<8x8x32xf32>
    %63 = arith.mulf %62, %0 : vector<8x8x32xf32>
    %cst_35 = arith.constant dense<0.000000e+00> : vector<8x32xf32>
    %64 = vector.multi_reduction <add>, %63, %cst_35 [1] : vector<8x8x32xf32> to vector<8x32xf32>
    %cst_36 = arith.constant dense<0xFF800000> : vector<8x32xf32>
    %65 = vector.multi_reduction <maximumf>, %0, %cst_36 [1] : vector<8x8x32xf32> to vector<8x32xf32>
    %c0_37 = arith.constant 0 : index
    %c0_38 = arith.constant 0 : index
    %66 = vector.load %arg10[%c0_37, %c0_38] : memref<100x32xf32, #tpu.memory_space<vmem>>, vector<100x32xf32>
    %cst_39 = arith.constant dense<0.000000e+00> : vector<8x32xf32>
    %67 = tpu.matmul %61, %66, %cst_39 {dimension_numbers = #tpu.dot_dimension_numbers<[1], [0], [0], [1], [0, 0, 1, 1], [], []>} : vector<8x100xf32>, vector<100x32xf32>, vector<8x32xf32> -> vector<8x32xf32>
    %c0_40 = arith.constant 0 : index
    %c0_41 = arith.constant 0 : index
    %68 = vector.load %arg11[%c0_40, %c0_41] : memref<32x32xf32, #tpu.memory_space<vmem>>, vector<32x32xf32>
    %cst_42 = arith.constant dense<0.000000e+00> : vector<8x32xf32>
    %69 = tpu.matmul %64, %68, %cst_42 {dimension_numbers = #tpu.dot_dimension_numbers<[1], [0], [0], [1], [0, 0, 1, 1], [], []>} : vector<8x32xf32>, vector<32x32xf32>, vector<8x32xf32> -> vector<8x32xf32>
    %70 = arith.addf %67, %69 : vector<8x32xf32>
    %c0_43 = arith.constant 0 : index
    %c0_44 = arith.constant 0 : index
    %71 = vector.load %arg12[%c0_43, %c0_44] : memref<32x32xf32, #tpu.memory_space<vmem>>, vector<32x32xf32>
    %cst_45 = arith.constant dense<0.000000e+00> : vector<8x32xf32>
    %72 = tpu.matmul %65, %71, %cst_45 {dimension_numbers = #tpu.dot_dimension_numbers<[1], [0], [0], [1], [0, 0, 1, 1], [], []>} : vector<8x32xf32>, vector<32x32xf32>, vector<8x32xf32> -> vector<8x32xf32>
    %73 = arith.addf %70, %72 : vector<8x32xf32>
    %c0_46 = arith.constant 0 : index
    %c0_47 = arith.constant 0 : index
    %74 = vector.load %arg13[%c0_46, %c0_47] : memref<1x32xf32, #tpu.memory_space<vmem>>, vector<1x32xf32>
    %75 = vector.broadcast %74 : vector<1x32xf32> to vector<8x32xf32>
    %76 = arith.addf %73, %75 : vector<8x32xf32>
    %77 = math.tanh %76 : vector<8x32xf32>
    %c0_48 = arith.constant 0 : index
    %c0_49 = arith.constant 0 : index
    %78 = vector.load %arg14[%c0_48, %c0_49] : memref<32x3xf32, #tpu.memory_space<vmem>>, vector<32x3xf32>
    %cst_50 = arith.constant dense<0.000000e+00> : vector<8x3xf32>
    %79 = tpu.matmul %77, %78, %cst_50 {dimension_numbers = #tpu.dot_dimension_numbers<[1], [0], [0], [1], [0, 0, 1, 1], [], []>} : vector<8x32xf32>, vector<32x3xf32>, vector<8x3xf32> -> vector<8x3xf32>
    %c0_51 = arith.constant 0 : index
    %c0_52 = arith.constant 0 : index
    %80 = vector.load %arg15[%c0_51, %c0_52] : memref<1x3xf32, #tpu.memory_space<vmem>>, vector<1x3xf32>
    %81 = vector.broadcast %80 : vector<1x3xf32> to vector<8x3xf32>
    %82 = arith.addf %79, %81 : vector<8x3xf32>
    %c0_53 = arith.constant 0 : index
    %c0_54 = arith.constant 0 : index
    %83 = vector.load %arg16[%c0_53, %c0_54] : memref<8x3xf32, #tpu.memory_space<vmem>>, vector<8x3xf32>
    tpu.vector_store %arg16[%c0_53, %c0_54], %82 {strides = array<i32>} : memref<8x3xf32, #tpu.memory_space<vmem>>, vector<8x3xf32>,
    return
  }
  func.func @transform_0(%arg0: i32) -> (i32, i32, i32) {
    %c0_i32 = arith.constant 0 : i32
    %c0_i32_0 = arith.constant 0 : i32
    %c0_i32_1 = arith.constant 0 : i32
    return %arg0, %c0_i32, %c0_i32_0 : i32, i32, i32
  }
  func.func @transform_1(%arg0: i32) -> (i32, i32, i32) {
    %c0_i32 = arith.constant 0 : i32
    %c0_i32_0 = arith.constant 0 : i32
    %c0_i32_1 = arith.constant 0 : i32
    return %arg0, %c0_i32, %c0_i32_0 : i32, i32, i32
  }
  func.func @transform_2(%arg0: i32) -> (i32, i32, i32) {
    %c0_i32 = arith.constant 0 : i32
    %c0_i32_0 = arith.constant 0 : i32
    %c0_i32_1 = arith.constant 0 : i32
    return %arg0, %c0_i32, %c0_i32_0 : i32, i32, i32
  }
  func.func @transform_3(%arg0: i32) -> (i32, i32, i32) {
    %c0_i32 = arith.constant 0 : i32
    %c0_i32_0 = arith.constant 0 : i32
    %c0_i32_1 = arith.constant 0 : i32
    return %arg0, %c0_i32, %c0_i32_0 : i32, i32, i32
  }
  func.func @transform_4(%arg0: i32) -> (i32, i32, i32) {
    %c0_i32 = arith.constant 0 : i32
    %c0_i32_0 = arith.constant 0 : i32
    %c0_i32_1 = arith.constant 0 : i32
    %c0_i32_2 = arith.constant 0 : i32
    return %c0_i32, %c0_i32_0, %c0_i32_1 : i32, i32, i32
  }
  func.func @transform_5(%arg0: i32) -> (i32, i32, i32) {
    %c0_i32 = arith.constant 0 : i32
    %c0_i32_0 = arith.constant 0 : i32
    %c0_i32_1 = arith.constant 0 : i32
    %c0_i32_2 = arith.constant 0 : i32
    return %c0_i32, %c0_i32_0, %c0_i32_1 : i32, i32, i32
  }
  func.func @transform_6(%arg0: i32) -> (i32, i32, i32) {
    %c0_i32 = arith.constant 0 : i32
    %c0_i32_0 = arith.constant 0 : i32
    %c0_i32_1 = arith.constant 0 : i32
    %c0_i32_2 = arith.constant 0 : i32
    return %c0_i32, %c0_i32_0, %c0_i32_1 : i32, i32, i32
  }
  func.func @transform_7(%arg0: i32) -> (i32, i32, i32) {
    %c0_i32 = arith.constant 0 : i32
    %c0_i32_0 = arith.constant 0 : i32
    %c0_i32_1 = arith.constant 0 : i32
    %c0_i32_2 = arith.constant 0 : i32
    return %c0_i32, %c0_i32_0, %c0_i32_1 : i32, i32, i32
  }
  func.func @transform_8(%arg0: i32) -> (i32, i32, i32) {
    %c0_i32 = arith.constant 0 : i32
    %c0_i32_0 = arith.constant 0 : i32
    %c0_i32_1 = arith.constant 0 : i32
    %c0_i32_2 = arith.constant 0 : i32
    return %c0_i32, %c0_i32_0, %c0_i32_1 : i32, i32, i32
  }
  func.func @transform_9(%arg0: i32) -> (i32, i32) {
    %c0_i32 = arith.constant 0 : i32
    %c0_i32_0 = arith.constant 0 : i32
    %c0_i32_1 = arith.constant 0 : i32
    return %c0_i32, %c0_i32_0 : i32, i32
  }
  func.func @transform_10(%arg0: i32) -> (i32, i32) {
    %c0_i32 = arith.constant 0 : i32
    %c0_i32_0 = arith.constant 0 : i32
    %c0_i32_1 = arith.constant 0 : i32
    return %c0_i32, %c0_i32_0 : i32, i32
  }
  func.func @transform_11(%arg0: i32) -> (i32, i32) {
    %c0_i32 = arith.constant 0 : i32
    %c0_i32_0 = arith.constant 0 : i32
    %c0_i32_1 = arith.constant 0 : i32
    return %c0_i32, %c0_i32_0 : i32, i32
  }
  func.func @transform_12(%arg0: i32) -> (i32, i32) {
    %c0_i32 = arith.constant 0 : i32
    %c0_i32_0 = arith.constant 0 : i32
    %c0_i32_1 = arith.constant 0 : i32
    return %c0_i32, %c0_i32_0 : i32, i32
  }
  func.func @transform_13(%arg0: i32) -> (i32, i32) {
    %c0_i32 = arith.constant 0 : i32
    %c0_i32_0 = arith.constant 0 : i32
    %c0_i32_1 = arith.constant 0 : i32
    return %c0_i32, %c0_i32_0 : i32, i32
  }
  func.func @transform_14(%arg0: i32) -> (i32, i32) {
    %c0_i32 = arith.constant 0 : i32
    %c0_i32_0 = arith.constant 0 : i32
    %c0_i32_1 = arith.constant 0 : i32
    return %c0_i32, %c0_i32_0 : i32, i32
  }
  func.func @transform_15(%arg0: i32) -> (i32, i32) {
    %c0_i32 = arith.constant 0 : i32
    %c0_i32_0 = arith.constant 0 : i32
    return %arg0, %c0_i32 : i32, i32
  }
}

</mosaic_0001>

<llo_original>
// kernel: primary_imn_forward.1
$region0: #{primary_imn_forward.1}
  #allocation0 [shape = 'u32[]', space=smem, size = 0x4, offset = 0x4, fixed_abs, tag = 'smem constant byte address 0x4 - core index']
  #allocation1 [shape = 'u32[144,128]{1,0:T(1,128)}', space=vmem, size = 0x12000, scoped, tag = 'internal scratch']
  %s0 = inlined_call_operand.vmem [shape: f32[8,8,32], index: 0, kind: input, shape index: {}]
  %s1 = inlined_call_operand.vmem [shape: f32[8,8,16], index: 1, kind: input, shape index: {}]
  %s2 = inlined_call_operand.vmem [shape: f32[8,8,100], index: 2, kind: input, shape index: {}]
  %s3 = inlined_call_operand.vmem [shape: f32[8,1,32], index: 3, kind: input, shape index: {}]
  %s4 = inlined_call_operand.vmem [shape: f32[2,1,32], index: 4, kind: input, shape index: {}]
  %s5 = inlined_call_operand.vmem [shape: f32[1,1,100], index: 5, kind: input, shape index: {}]
  %s6 = inlined_call_operand.vmem [shape: f32[1,1,16], index: 6, kind: input, shape index: {}]
  %s7 = inlined_call_operand.vmem [shape: f32[1,1,32], index: 7, kind: input, shape index: {}]
  %s8 = inlined_call_operand.vmem [shape: f32[1,1,2], index: 8, kind: input, shape index: {}]
  %s9 = inlined_call_operand.vmem [shape: f32[100,32], index: 9, kind: input, shape index: {}]
  %s10 = inlined_call_operand.vmem [shape: f32[32,32], index: 10, kind: input, shape index: {}]
  %s11 = inlined_call_operand.vmem [shape: f32[32,32], index: 11, kind: input, shape index: {}]
  %s12 = inlined_call_operand.vmem [shape: f32[1,32], index: 12, kind: input, shape index: {}]
  %s13 = inlined_call_operand.vmem [shape: f32[32,3], index: 13, kind: input, shape index: {}]
  %s14 = inlined_call_operand.vmem [shape: f32[1,3], index: 14, kind: input, shape index: {}]
  %s15 = inlined_call_operand.vmem [shape: f32[8,3], index: 15, kind: output, shape index: {}]
  %s16 = sld [smem:[#allocation0]]
  $region70: #{primary_imn_forward.1} parent=0
    _
  %s18 = ssub.s32 1, %s16
  %s19 = scalar_select 0, %s18, %s16
  // Predicated region
  $region2: #{primary_imn_forward.1} parent=0 // pred_check
    _
  $region3: #{primary_imn_forward.1} parent=0 // pred_check_branch
    %21 = sbr.rel (0) target = $region5
  $region4: #{primary_imn_forward.1} parent=0 // pred_region
    _
  $region5: #{primary_imn_forward.1} parent=0 // pred_fallthru
    _
  // Predicated region
  $region6: #{primary_imn_forward.1} parent=0 // pred_check
    _
  $region7: #{primary_imn_forward.1} parent=0 // pred_check_branch
    %23 = sbr.rel (0) target = $region9
  $region8: #{primary_imn_forward.1} parent=0 // pred_region
    _
  $region9: #{primary_imn_forward.1} parent=0 // pred_fallthru
    _
  // Predicated region
  $region10: #{primary_imn_forward.1} parent=0 // pred_check
    _
  $region11: #{primary_imn_forward.1} parent=0 // pred_check_branch
    %25 = sbr.rel (0) target = $region13
  $region12: #{primary_imn_forward.1} parent=0 // pred_region
    _
  $region13: #{primary_imn_forward.1} parent=0 // pred_fallthru
    _
  // Predicated region
  $region14: #{primary_imn_forward.1} parent=0 // pred_check
    _
  $region15: #{primary_imn_forward.1} parent=0 // pred_check_branch
    %27 = sbr.rel (0) target = $region17
  $region16: #{primary_imn_forward.1} parent=0 // pred_region
    _
  $region17: #{primary_imn_forward.1} parent=0 // pred_fallthru
    _
  // Predicated region
  $region18: #{primary_imn_forward.1} parent=0 // pred_check
    _
  $region19: #{primary_imn_forward.1} parent=0 // pred_check_branch
    %29 = sbr.rel (0) target = $region21
  $region20: #{primary_imn_forward.1} parent=0 // pred_region
    _
  $region21: #{primary_imn_forward.1} parent=0 // pred_fallthru
    _
  // Predicated region
  $region22: #{primary_imn_forward.1} parent=0 // pred_check
    _
  $region23: #{primary_imn_forward.1} parent=0 // pred_check_branch
    %31 = sbr.rel (0) target = $region25
  $region24: #{primary_imn_forward.1} parent=0 // pred_region
    _
  $region25: #{primary_imn_forward.1} parent=0 // pred_fallthru
    _
  // Predicated region
  $region26: #{primary_imn_forward.1} parent=0 // pred_check
    _
  $region27: #{primary_imn_forward.1} parent=0 // pred_check_branch
    %33 = sbr.rel (0) target = $region29
  $region28: #{primary_imn_forward.1} parent=0 // pred_region
    _
  $region29: #{primary_imn_forward.1} parent=0 // pred_fallthru
    _
  // Predicated region
  $region30: #{primary_imn_forward.1} parent=0 // pred_check
    _
  $region31: #{primary_imn_forward.1} parent=0 // pred_check_branch
    %35 = sbr.rel (0) target = $region33
  $region32: #{primary_imn_forward.1} parent=0 // pred_region
    _
  $region33: #{primary_imn_forward.1} parent=0 // pred_fallthru
    _
  // Predicated region
  $region34: #{primary_imn_forward.1} parent=0 // pred_check
    _
  $region35: #{primary_imn_forward.1} parent=0 // pred_check_branch
    %37 = sbr.rel (0) target = $region37
  $region36: #{primary_imn_forward.1} parent=0 // pred_region
    _
  $region37: #{primary_imn_forward.1} parent=0 // pred_fallthru
    _
  // Predicated region
  $region38: #{primary_imn_forward.1} parent=0 // pred_check
    _
  $region39: #{primary_imn_forward.1} parent=0 // pred_check_branch
    %39 = sbr.rel (0) target = $region41
  $region40: #{primary_imn_forward.1} parent=0 // pred_region
    _
  $region41: #{primary_imn_forward.1} parent=0 // pred_fallthru
    _
  // Predicated region
  $region42: #{primary_imn_forward.1} parent=0 // pred_check
    _
  $region43: #{primary_imn_forward.1} parent=0 // pred_check_branch
    %41 = sbr.rel (0) target = $region45
  $region44: #{primary_imn_forward.1} parent=0 // pred_region
    _
  $region45: #{primary_imn_forward.1} parent=0 // pred_fallthru
    _
  // Predicated region
  $region46: #{primary_imn_forward.1} parent=0 // pred_check
    _
  $region47: #{primary_imn_forward.1} parent=0 // pred_check_branch
    %43 = sbr.rel (0) target = $region49
  $region48: #{primary_imn_forward.1} parent=0 // pred_region
    _
  $region49: #{primary_imn_forward.1} parent=0 // pred_fallthru
    _
  // Predicated region
  $region50: #{primary_imn_forward.1} parent=0 // pred_check
    _
  $region51: #{primary_imn_forward.1} parent=0 // pred_check_branch
    %45 = sbr.rel (0) target = $region53
  $region52: #{primary_imn_forward.1} parent=0 // pred_region
    _
  $region53: #{primary_imn_forward.1} parent=0 // pred_fallthru
    _
  // Predicated region
  $region54: #{primary_imn_forward.1} parent=0 // pred_check
    _
  $region55: #{primary_imn_forward.1} parent=0 // pred_check_branch
    %47 = sbr.rel (0) target = $region57
  $region56: #{primary_imn_forward.1} parent=0 // pred_region
    _
  $region57: #{primary_imn_forward.1} parent=0 // pred_fallthru
    _
  // Predicated region
  $region58: #{primary_imn_forward.1} parent=0 // pred_check
    _
  $region59: #{primary_imn_forward.1} parent=0 // pred_check_branch
    %49 = sbr.rel (0) target = $region61
  $region60: #{primary_imn_forward.1} parent=0 // pred_region
    _
  $region61: #{primary_imn_forward.1} parent=0 // pred_fallthru
    _
  %v50 = vld [vmem:[%s0] sm:$0xff]
  %v51 = vld [vmem:[%s0 + $0x8] sm:$0xff]
  %v52 = vld [vmem:[%s0 + $0x10] sm:$0xff]
  %v53 = vld [vmem:[%s0 + $0x18] sm:$0xff]
  %v54 = vld [vmem:[%s0 + $0x20] sm:$0xff]
  %v55 = vld [vmem:[%s0 + $0x28] sm:$0xff]
  %v56 = vld [vmem:[%s0 + $0x30] sm:$0xff]
  %v57 = vld [vmem:[%s0 + $0x38] sm:$0xff]
  %v58 = vld [vmem:[%s1] sm:$0xff]
  %v59 = vld [vmem:[%s1 + $0x8] sm:$0xff]
  %v60 = vld [vmem:[%s1 + $0x10] sm:$0xff]
  %v61 = vld [vmem:[%s1 + $0x18] sm:$0xff]
  %v62 = vld [vmem:[%s1 + $0x20] sm:$0xff]
  %v63 = vld [vmem:[%s1 + $0x28] sm:$0xff]
  %v64 = vld [vmem:[%s1 + $0x30] sm:$0xff]
  %v65 = vld [vmem:[%s1 + $0x38] sm:$0xff]
  %v66 = vld [vmem:[%s2] sm:$0xff]
  %v67 = vld [vmem:[%s2 + $0x8] sm:$0xff]
  %v68 = vld [vmem:[%s2 + $0x10] sm:$0xff]
  %v69 = vld [vmem:[%s2 + $0x18] sm:$0xff]
  %v70 = vld [vmem:[%s2 + $0x20] sm:$0xff]
  %v71 = vld [vmem:[%s2 + $0x28] sm:$0xff]
  %v72 = vld [vmem:[%s2 + $0x30] sm:$0xff]
  %v73 = vld [vmem:[%s2 + $0x38] sm:$0xff]
  %v74 = vld [vmem:[%s3] sm:$0x1]
  %v75 = vld [vmem:[%s3 + $0x1] sm:$0x1]
  %v76 = vld [vmem:[%s3 + $0x2] sm:$0x1]
  %v77 = vld [vmem:[%s3 + $0x3] sm:$0x1]
  %v78 = vld [vmem:[%s3 + $0x4] sm:$0x1]
  %v79 = vld [vmem:[%s3 + $0x5] sm:$0x1]
  %v80 = vld [vmem:[%s3 + $0x6] sm:$0x1]
  %v81 = vld [vmem:[%s3 + $0x7] sm:$0x1]
  %v82 = vld [vmem:[%s4] sm:$0x1]
  %v83 = vld [vmem:[%s4 + $0x1] sm:$0x1]
  %v84 = vld [vmem:[%s8] sm:$0x1]
  %v86 = vlaneseq
  %v87 = vshrl.u32 %v86, 7
  %v88 = vsub.s32 0, %v87
  %v89 = vrot.slane %v82, %v88
  %v91 = vmul.f32 %v50, %v89
  %v92 = vmul.f32 %v51, %v89
  %v93 = vmul.f32 %v52, %v89
  %v94 = vmul.f32 %v53, %v89
  %v95 = vmul.f32 %v54, %v89
  %v96 = vmul.f32 %v55, %v89
  %v97 = vmul.f32 %v56, %v89
  %v98 = vmul.f32 %v57, %v89
  %vm99 = vcmask 261120
  %v100 = vsel %vm99, %v91, 0.0
  %101 = vadd.xlane.f32.xlu0 %v100
  %v102 = vpop.xlane.xlu0 %101
  %v103 = vsel %vm99, %v92, 0.0
  %104 = vadd.xlane.f32.xlu0 %v103
  %v105 = vpop.xlane.xlu0 %104
  %v106 = vsel %vm99, %v93, 0.0
  %107 = vadd.xlane.f32.xlu0 %v106
  %v108 = vpop.xlane.xlu0 %107
  %v109 = vsel %vm99, %v94, 0.0
  %110 = vadd.xlane.f32.xlu0 %v109
  %v111 = vpop.xlane.xlu0 %110
  %v112 = vsel %vm99, %v95, 0.0
  %113 = vadd.xlane.f32.xlu0 %v112
  %v114 = vpop.xlane.xlu0 %113
  %v115 = vsel %vm99, %v96, 0.0
  %116 = vadd.xlane.f32.xlu0 %v115
  %v117 = vpop.xlane.xlu0 %116
  %v118 = vsel %vm99, %v97, 0.0
  %119 = vadd.xlane.f32.xlu0 %v118
  %v120 = vpop.xlane.xlu0 %119
  %v121 = vsel %vm99, %v98, 0.0
  %122 = vadd.xlane.f32.xlu0 %v121
  %v123 = vpop.xlane.xlu0 %122
  %v124 = vld [vmem:[%s5] sm:$0x1]
  %v126 = vlaneseq
  %v127 = vshrl.u32 %v126, 7
  %v128 = vsub.s32 0, %v127
  %v129 = vrot.slane %v124, %v128
  %v131 = vmul.f32 %v66, %v129
  %v132 = vmul.f32 %v67, %v129
  %v133 = vmul.f32 %v68, %v129
  %v134 = vmul.f32 %v69, %v129
  %v135 = vmul.f32 %v70, %v129
  %v136 = vmul.f32 %v71, %v129
  %v137 = vmul.f32 %v72, %v129
  %v138 = vmul.f32 %v73, %v129
  %vm139 = vcmask 818176
  %v140 = vsel %vm139, %v131, 0.0
  %141 = vadd.xlane.f32.xlu0 %v140
  %v142 = vpop.xlane.xlu0 %141
  %v143 = vsel %vm139, %v132, 0.0
  %144 = vadd.xlane.f32.xlu0 %v143
  %v145 = vpop.xlane.xlu0 %144
  %v146 = vsel %vm139, %v133, 0.0
  %147 = vadd.xlane.f32.xlu0 %v146
  %v148 = vpop.xlane.xlu0 %147
  %v149 = vsel %vm139, %v134, 0.0
  %150 = vadd.xlane.f32.xlu0 %v149
  %v151 = vpop.xlane.xlu0 %150
  %v152 = vsel %vm139, %v135, 0.0
  %153 = vadd.xlane.f32.xlu0 %v152
  %v154 = vpop.xlane.xlu0 %153
  %v155 = vsel %vm139, %v136, 0.0
  %156 = vadd.xlane.f32.xlu0 %v155
  %v157 = vpop.xlane.xlu0 %156
  %v158 = vsel %vm139, %v137, 0.0
  %159 = vadd.xlane.f32.xlu0 %v158
  %v160 = vpop.xlane.xlu0 %159
  %v161 = vsel %vm139, %v138, 0.0
  %162 = vadd.xlane.f32.xlu0 %v161
  %v163 = vpop.xlane.xlu0 %162
  %v164 = vadd.f32 %v102, %v142
  %v165 = vadd.f32 %v105, %v145
  %v166 = vadd.f32 %v108, %v148
  %v167 = vadd.f32 %v111, %v151
  %v168 = vadd.f32 %v114, %v154
  %v169 = vadd.f32 %v117, %v157
  %v170 = vadd.f32 %v120, %v160
  %v171 = vadd.f32 %v123, %v163
  %v173 = vlaneseq
  %v174 = vshrl.u32 %v173, 7
  %v175 = vsub.s32 0, %v174
  %v176 = vrot.slane %v84, %v175
  %v178 = vadd.f32 %v164, %v176
  %v179 = vadd.f32 %v165, %v176
  %v180 = vadd.f32 %v166, %v176
  %v181 = vadd.f32 %v167, %v176
  %v182 = vadd.f32 %v168, %v176
  %v183 = vadd.f32 %v169, %v176
  %v184 = vadd.f32 %v170, %v176
  %v185 = vadd.f32 %v171, %v176
  %v187 = vlaneseq
  %v188 = vshrl.u32 %v187, 7
  %v189 = vsub.s32 0, %v188
  %v190 = vrot.slane %v83, %v189
  %v192 = vmul.f32 %v50, %v190
  %v193 = vmul.f32 %v51, %v190
  %v194 = vmul.f32 %v52, %v190
  %v195 = vmul.f32 %v53, %v190
  %v196 = vmul.f32 %v54, %v190
  %v197 = vmul.f32 %v55, %v190
  %v198 = vmul.f32 %v56, %v190
  %v199 = vmul.f32 %v57, %v190
  %v200 = vsel %vm99, %v192, 0.0
  %201 = vadd.xlane.f32.xlu0 %v200
  %v202 = vpop.xlane.xlu0 %201
  %v203 = vsel %vm99, %v193, 0.0
  %204 = vadd.xlane.f32.xlu0 %v203
  %v205 = vpop.xlane.xlu0 %204
  %v206 = vsel %vm99, %v194, 0.0
  %207 = vadd.xlane.f32.xlu0 %v206
  %v208 = vpop.xlane.xlu0 %207
  %v209 = vsel %vm99, %v195, 0.0
  %210 = vadd.xlane.f32.xlu0 %v209
  %v211 = vpop.xlane.xlu0 %210
  %v212 = vsel %vm99, %v196, 0.0
  %213 = vadd.xlane.f32.xlu0 %v212
  %v214 = vpop.xlane.xlu0 %213
  %v215 = vsel %vm99, %v197, 0.0
  %216 = vadd.xlane.f32.xlu0 %v215
  %v217 = vpop.xlane.xlu0 %216
  %v218 = vsel %vm99, %v198, 0.0
  %219 = vadd.xlane.f32.xlu0 %v218
  %v220 = vpop.xlane.xlu0 %219
  %v221 = vsel %vm99, %v199, 0.0
  %222 = vadd.xlane.f32.xlu0 %v221
  %v223 = vpop.xlane.xlu0 %222
  %v224 = vld [vmem:[%s6] sm:$0x1]
  %v226 = vlaneseq
  %v227 = vshrl.u32 %v226, 7
  %v228 = vsub.s32 0, %v227
  %v229 = vrot.slane %v224, %v228
  %v231 = vmul.f32 %v58, %v229
  %v232 = vmul.f32 %v59, %v229
  %v233 = vmul.f32 %v60, %v229
  %v234 = vmul.f32 %v61, %v229
  %v235 = vmul.f32 %v62, %v229
  %v236 = vmul.f32 %v63, %v229
  %v237 = vmul.f32 %v64, %v229
  %v238 = vmul.f32 %v65, %v229
  %vm239 = vcmask 130048
  %v240 = vsel %vm239, %v231, 0.0
  %241 = vadd.xlane.f32.xlu0 %v240
  %v242 = vpop.xlane.xlu0 %241
  %v243 = vsel %vm239, %v232, 0.0
  %244 = vadd.xlane.f32.xlu0 %v243
  %v245 = vpop.xlane.xlu0 %244
  %v246 = vsel %vm239, %v233, 0.0
  %247 = vadd.xlane.f32.xlu0 %v246
  %v248 = vpop.xlane.xlu0 %247
  %v249 = vsel %vm239, %v234, 0.0
  %250 = vadd.xlane.f32.xlu0 %v249
  %v251 = vpop.xlane.xlu0 %250
  %v252 = vsel %vm239, %v235, 0.0
  %253 = vadd.xlane.f32.xlu0 %v252
  %v254 = vpop.xlane.xlu0 %253
  %v255 = vsel %vm239, %v236, 0.0
  %256 = vadd.xlane.f32.xlu0 %v255
  %v257 = vpop.xlane.xlu0 %256
  %v258 = vsel %vm239, %v237, 0.0
  %259 = vadd.xlane.f32.xlu0 %v258
  %v260 = vpop.xlane.xlu0 %259
  %v261 = vsel %vm239, %v238, 0.0
  %262 = vadd.xlane.f32.xlu0 %v261
  %v263 = vpop.xlane.xlu0 %262
  %v264 = vadd.f32 %v202, %v242
  %v265 = vadd.f32 %v205, %v245
  %v266 = vadd.f32 %v208, %v248
  %v267 = vadd.f32 %v211, %v251
  %v268 = vadd.f32 %v214, %v254
  %v269 = vadd.f32 %v217, %v257
  %v270 = vadd.f32 %v220, %v260
  %v271 = vadd.f32 %v223, %v263
  %v272 = vld [vmem:[%s7] sm:$0x1]
  %v273 = vmul.f32 %v74, %v272
  %v274 = vmul.f32 %v75, %v272
  %v275 = vmul.f32 %v76, %v272
  %v276 = vmul.f32 %v77, %v272
  %v277 = vmul.f32 %v78, %v272
  %v278 = vmul.f32 %v79, %v272
  %v279 = vmul.f32 %v80, %v272
  %v280 = vmul.f32 %v81, %v272
  %vm281 = vcmask 253952
  %v282 = vsel %vm281, %v273, 0.0
  %283 = vadd.xlane.f32.xlu0 %v282
  %v284 = vpop.xlane.xlu0 %283
  %v285 = vsel %vm281, %v274, 0.0
  %286 = vadd.xlane.f32.xlu0 %v285
  %v287 = vpop.xlane.xlu0 %286
  %v288 = vsel %vm281, %v275, 0.0
  %289 = vadd.xlane.f32.xlu0 %v288
  %v290 = vpop.xlane.xlu0 %289
  %v291 = vsel %vm281, %v276, 0.0
  %292 = vadd.xlane.f32.xlu0 %v291
  %v293 = vpop.xlane.xlu0 %292
  %v294 = vsel %vm281, %v277, 0.0
  %295 = vadd.xlane.f32.xlu0 %v294
  %v296 = vpop.xlane.xlu0 %295
  %v297 = vsel %vm281, %v278, 0.0
  %298 = vadd.xlane.f32.xlu0 %v297
  %v299 = vpop.xlane.xlu0 %298
  %v300 = vsel %vm281, %v279, 0.0
  %301 = vadd.xlane.f32.xlu0 %v300
  %v302 = vpop.xlane.xlu0 %301
  %v303 = vsel %vm281, %v280, 0.0
  %304 = vadd.xlane.f32.xlu0 %v303
  %v305 = vpop.xlane.xlu0 %304
  %v306 = vlaneseq
  %v307 = vshrl.u32 %v306, 7
  %v308 = vsub.s32 0, %v307
  %v309 = vrot.slane %v284, %v308
  %v310 = vlaneseq
  %v311 = vshrl.u32 %v310, 7
  %v312 = vsub.s32 0, %v311
  %v313 = vrot.slane %v287, %v312
  %v314 = vlaneseq
  %v315 = vshrl.u32 %v314, 7
  %v316 = vsub.s32 0, %v315
  %v317 = vrot.slane %v290, %v316
  %v318 = vlaneseq
  %v319 = vshrl.u32 %v318, 7
  %v320 = vsub.s32 0, %v319
  %v321 = vrot.slane %v293, %v320
  %v322 = vlaneseq
  %v323 = vshrl.u32 %v322, 7
  %v324 = vsub.s32 0, %v323
  %v325 = vrot.slane %v296, %v324
  %v326 = vlaneseq
  %v327 = vshrl.u32 %v326, 7
  %v328 = vsub.s32 0, %v327
  %v329 = vrot.slane %v299, %v328
  %v330 = vlaneseq
  %v331 = vshrl.u32 %v330, 7
  %v332 = vsub.s32 0, %v331
  %v333 = vrot.slane %v302, %v332
  %v334 = vlaneseq
  %v335 = vshrl.u32 %v334, 7
  %v336 = vsub.s32 0, %v335
  %v337 = vrot.slane %v305, %v336
  %v338 = vadd.f32 %v264, %v309
  %v339 = vadd.f32 %v265, %v313
  %v340 = vadd.f32 %v266, %v317
  %v341 = vadd.f32 %v267, %v321
  %v342 = vadd.f32 %v268, %v325
  %v343 = vadd.f32 %v269, %v329
  %v344 = vadd.f32 %v270, %v333
  %v345 = vadd.f32 %v271, %v337
  %v346 = vadd.f32 %v338, %v176
  %v347 = vadd.f32 %v339, %v176
  %v348 = vadd.f32 %v340, %v176
  %v349 = vadd.f32 %v341, %v176
  %v350 = vadd.f32 %v342, %v176
  %v351 = vadd.f32 %v343, %v176
  %v352 = vadd.f32 %v344, %v176
  %v353 = vadd.f32 %v345, %v176
  %vm354 = vcmask 7168
  %v355 = vsel %vm354, %v178, -inf
  %v356 = vrot.slane %v355, 4
  %v357 = vmax.f32 %v355, %v356
  %v358 = vrot.slane %v357, 2
  %v359 = vmax.f32 %v357, %v358
  %v360 = vrot.slane %v359, 1
  %v361 = vmax.f32 %v359, %v360
  %v362 = vsel %vm354, %v179, -inf
  %v363 = vrot.slane %v362, 4
  %v364 = vmax.f32 %v362, %v363
  %v365 = vrot.slane %v364, 2
  %v366 = vmax.f32 %v364, %v365
  %v367 = vrot.slane %v366, 1
  %v368 = vmax.f32 %v366, %v367
  %v369 = vsel %vm354, %v180, -inf
  %v370 = vrot.slane %v369, 4
  %v371 = vmax.f32 %v369, %v370
  %v372 = vrot.slane %v371, 2
  %v373 = vmax.f32 %v371, %v372
  %v374 = vrot.slane %v373, 1
  %v375 = vmax.f32 %v373, %v374
  %v376 = vsel %vm354, %v181, -inf
  %v377 = vrot.slane %v376, 4
  %v378 = vmax.f32 %v376, %v377
  %v379 = vrot.slane %v378, 2
  %v380 = vmax.f32 %v378, %v379
  %v381 = vrot.slane %v380, 1
  %v382 = vmax.f32 %v380, %v381
  %v383 = vsel %vm354, %v182, -inf
  %v384 = vrot.slane %v383, 4
  %v385 = vmax.f32 %v383, %v384
  %v386 = vrot.slane %v385, 2
  %v387 = vmax.f32 %v385, %v386
  %v388 = vrot.slane %v387, 1
  %v389 = vmax.f32 %v387, %v388
  %v390 = vsel %vm354, %v183, -inf
  %v391 = vrot.slane %v390, 4
  %v392 = vmax.f32 %v390, %v391
  %v393 = vrot.slane %v392, 2
  %v394 = vmax.f32 %v392, %v393
  %v395 = vrot.slane %v394, 1
  %v396 = vmax.f32 %v394, %v395
  %v397 = vsel %vm354, %v184, -inf
  %v398 = vrot.slane %v397, 4
  %v399 = vmax.f32 %v397, %v398
  %v400 = vrot.slane %v399, 2
  %v401 = vmax.f32 %v399, %v400
  %v402 = vrot.slane %v401, 1
  %v403 = vmax.f32 %v401, %v402
  %v404 = vsel %vm354, %v185, -inf
  %v405 = vrot.slane %v404, 4
  %v406 = vmax.f32 %v404, %v405
  %v407 = vrot.slane %v406, 2
  %v408 = vmax.f32 %v406, %v407
  %v409 = vrot.slane %v408, 1
  %v410 = vmax.f32 %v408, %v409
  %v411 = vsub.f32 %v178, %v361
  %v412 = vsub.f32 %v179, %v368
  %v413 = vsub.f32 %v180, %v375
  %v414 = vsub.f32 %v181, %v382
  %v415 = vsub.f32 %v182, %v389
  %v416 = vsub.f32 %v183, %v396
  %v417 = vsub.f32 %v184, %v403
  %v418 = vsub.f32 %v185, %v410
  %v419 = vmul.f32 %v411, 1.442695
  %v420 = vpow.pop %v419
  %v421 = vmul.f32 %v412, 1.442695
  %v422 = vpow.pop %v421
  %v423 = vmul.f32 %v413, 1.442695
  %v424 = vpow.pop %v423
  %v425 = vmul.f32 %v414, 1.442695
  %v426 = vpow.pop %v425
  %v427 = vmul.f32 %v415, 1.442695
  %v428 = vpow.pop %v427
  %v429 = vmul.f32 %v416, 1.442695
  %v430 = vpow.pop %v429
  %v431 = vmul.f32 %v417, 1.442695
  %v432 = vpow.pop %v431
  %v433 = vmul.f32 %v418, 1.442695
  %v434 = vpow.pop %v433
  %v435 = vsel %vm354, %v420, 0.0
  %v436 = vrot.slane %v435, 4
  %v437 = vadd.f32 %v435, %v436
  %v438 = vrot.slane %v437, 2
  %v439 = vadd.f32 %v437, %v438
  %v440 = vrot.slane %v439, 1
  %v441 = vadd.f32 %v439, %v440
  %v442 = vsel %vm354, %v422, 0.0
  %v443 = vrot.slane %v442, 4
  %v444 = vadd.f32 %v442, %v443
  %v445 = vrot.slane %v444, 2
  %v446 = vadd.f32 %v444, %v445
  %v447 = vrot.slane %v446, 1
  %v448 = vadd.f32 %v446, %v447
  %v449 = vsel %vm354, %v424, 0.0
  %v450 = vrot.slane %v449, 4
  %v451 = vadd.f32 %v449, %v450
  %v452 = vrot.slane %v451, 2
  %v453 = vadd.f32 %v451, %v452
  %v454 = vrot.slane %v453, 1
  %v455 = vadd.f32 %v453, %v454
  %v456 = vsel %vm354, %v426, 0.0
  %v457 = vrot.slane %v456, 4
  %v458 = vadd.f32 %v456, %v457
  %v459 = vrot.slane %v458, 2
  %v460 = vadd.f32 %v458, %v459
  %v461 = vrot.slane %v460, 1
  %v462 = vadd.f32 %v460, %v461
  %v463 = vsel %vm354, %v428, 0.0
  %v464 = vrot.slane %v463, 4
  %v465 = vadd.f32 %v463, %v464
  %v466 = vrot.slane %v465, 2
  %v467 = vadd.f32 %v465, %v466
  %v468 = vrot.slane %v467, 1
  %v469 = vadd.f32 %v467, %v468
  %v470 = vsel %vm354, %v430, 0.0
  %v471 = vrot.slane %v470, 4
  %v472 = vadd.f32 %v470, %v471
  %v473 = vrot.slane %v472, 2
  %v474 = vadd.f32 %v472, %v473
  %v475 = vrot.slane %v474, 1
  %v476 = vadd.f32 %v474, %v475
  %v477 = vsel %vm354, %v432, 0.0
  %v478 = vrot.slane %v477, 4
  %v479 = vadd.f32 %v477, %v478
  %v480 = vrot.slane %v479, 2
  %v481 = vadd.f32 %v479, %v480
  %v482 = vrot.slane %v481, 1
  %v483 = vadd.f32 %v481, %v482
  %v484 = vsel %vm354, %v434, 0.0
  %v485 = vrot.slane %v484, 4
  %v486 = vadd.f32 %v484, %v485
  %v487 = vrot.slane %v486, 2
  %v488 = vadd.f32 %v486, %v487
  %v489 = vrot.slane %v488, 1
  %v490 = vadd.f32 %v488, %v489
  %v491 = vrcp.pop %v441
  %v492 = vmul.f32 %v420, %v491
  %v493 = vrcp.pop %v448
  %v494 = vmul.f32 %v422, %v493
  %v495 = vrcp.pop %v455
  %v496 = vmul.f32 %v424, %v495
  %v497 = vrcp.pop %v462
  %v498 = vmul.f32 %v426, %v497
  %v499 = vrcp.pop %v469
  %v500 = vmul.f32 %v428, %v499
  %v501 = vrcp.pop %v476
  %v502 = vmul.f32 %v430, %v501
  %v503 = vrcp.pop %v483
  %v504 = vmul.f32 %v432, %v503
  %v505 = vrcp.pop %v490
  %v506 = vmul.f32 %v434, %v505
  %vm507 = vcmask 15368
  %v508 = vsel %vm507, %v346, -inf
  %v509 = vrot.slane %v508, 4
  %v510 = vmax.f32 %v508, %v509
  %v511 = vrot.slane %v510, 2
  %v512 = vmax.f32 %v510, %v511
  %v513 = vrot.slane %v512, 1
  %v514 = vmax.f32 %v512, %v513
  %v515 = vsel %vm507, %v347, -inf
  %v516 = vrot.slane %v515, 4
  %v517 = vmax.f32 %v515, %v516
  %v518 = vrot.slane %v517, 2
  %v519 = vmax.f32 %v517, %v518
  %v520 = vrot.slane %v519, 1
  %v521 = vmax.f32 %v519, %v520
  %v522 = vsel %vm507, %v348, -inf
  %v523 = vrot.slane %v522, 4
  %v524 = vmax.f32 %v522, %v523
  %v525 = vrot.slane %v524, 2
  %v526 = vmax.f32 %v524, %v525
  %v527 = vrot.slane %v526, 1
  %v528 = vmax.f32 %v526, %v527
  %v529 = vsel %vm507, %v349, -inf
  %v530 = vrot.slane %v529, 4
  %v531 = vmax.f32 %v529, %v530
  %v532 = vrot.slane %v531, 2
  %v533 = vmax.f32 %v531, %v532
  %v534 = vrot.slane %v533, 1
  %v535 = vmax.f32 %v533, %v534
  %v536 = vsel %vm507, %v350, -inf
  %v537 = vrot.slane %v536, 4
  %v538 = vmax.f32 %v536, %v537
  %v539 = vrot.slane %v538, 2
  %v540 = vmax.f32 %v538, %v539
  %v541 = vrot.slane %v540, 1
  %v542 = vmax.f32 %v540, %v541
  %v543 = vsel %vm507, %v351, -inf
  %v544 = vrot.slane %v543, 4
  %v545 = vmax.f32 %v543, %v544
  %v546 = vrot.slane %v545, 2
  %v547 = vmax.f32 %v545, %v546
  %v548 = vrot.slane %v547, 1
  %v549 = vmax.f32 %v547, %v548
  %v550 = vsel %vm507, %v352, -inf
  %v551 = vrot.slane %v550, 4
  %v552 = vmax.f32 %v550, %v551
  %v553 = vrot.slane %v552, 2
  %v554 = vmax.f32 %v552, %v553
  %v555 = vrot.slane %v554, 1
  %v556 = vmax.f32 %v554, %v555
  %v557 = vsel %vm507, %v353, -inf
  %v558 = vrot.slane %v557, 4
  %v559 = vmax.f32 %v557, %v558
  %v560 = vrot.slane %v559, 2
  %v561 = vmax.f32 %v559, %v560
  %v562 = vrot.slane %v561, 1
  %v563 = vmax.f32 %v561, %v562
  %v564 = vsub.f32 %v346, %v514
  %v565 = vsub.f32 %v347, %v521
  %v566 = vsub.f32 %v348, %v528
  %v567 = vsub.f32 %v349, %v535
  %v568 = vsub.f32 %v350, %v542
  %v569 = vsub.f32 %v351, %v549
  %v570 = vsub.f32 %v352, %v556
  %v571 = vsub.f32 %v353, %v563
  %v572 = vmul.f32 %v564, 1.442695
  %v573 = vpow.pop %v572
  %v574 = vmul.f32 %v565, 1.442695
  %v575 = vpow.pop %v574
  %v576 = vmul.f32 %v566, 1.442695
  %v577 = vpow.pop %v576
  %v578 = vmul.f32 %v567, 1.442695
  %v579 = vpow.pop %v578
  %v580 = vmul.f32 %v568, 1.442695
  %v581 = vpow.pop %v580
  %v582 = vmul.f32 %v569, 1.442695
  %v583 = vpow.pop %v582
  %v584 = vmul.f32 %v570, 1.442695
  %v585 = vpow.pop %v584
  %v586 = vmul.f32 %v571, 1.442695
  %v587 = vpow.pop %v586
  %v588 = vsel %vm507, %v573, 0.0
  %v589 = vrot.slane %v588, 4
  %v590 = vadd.f32 %v588, %v589
  %v591 = vrot.slane %v590, 2
  %v592 = vadd.f32 %v590, %v591
  %v593 = vrot.slane %v592, 1
  %v594 = vadd.f32 %v592, %v593
  %v595 = vsel %vm507, %v575, 0.0
  %v596 = vrot.slane %v595, 4
  %v597 = vadd.f32 %v595, %v596
  %v598 = vrot.slane %v597, 2
  %v599 = vadd.f32 %v597, %v598
  %v600 = vrot.slane %v599, 1
  %v601 = vadd.f32 %v599, %v600
  %v602 = vsel %vm507, %v577, 0.0
  %v603 = vrot.slane %v602, 4
  %v604 = vadd.f32 %v602, %v603
  %v605 = vrot.slane %v604, 2
  %v606 = vadd.f32 %v604, %v605
  %v607 = vrot.slane %v606, 1
  %v608 = vadd.f32 %v606, %v607
  %v609 = vsel %vm507, %v579, 0.0
  %v610 = vrot.slane %v609, 4
  %v611 = vadd.f32 %v609, %v610
  %v612 = vrot.slane %v611, 2
  %v613 = vadd.f32 %v611, %v612
  %v614 = vrot.slane %v613, 1
  %v615 = vadd.f32 %v613, %v614
  %v616 = vsel %vm507, %v581, 0.0
  %v617 = vrot.slane %v616, 4
  %v618 = vadd.f32 %v616, %v617
  %v619 = vrot.slane %v618, 2
  %v620 = vadd.f32 %v618, %v619
  %v621 = vrot.slane %v620, 1
  %v622 = vadd.f32 %v620, %v621
  %v623 = vsel %vm507, %v583, 0.0
  %v624 = vrot.slane %v623, 4
  %v625 = vadd.f32 %v623, %v624
  %v626 = vrot.slane %v625, 2
  %v627 = vadd.f32 %v625, %v626
  %v628 = vrot.slane %v627, 1
  %v629 = vadd.f32 %v627, %v628
  %v630 = vsel %vm507, %v585, 0.0
  %v631 = vrot.slane %v630, 4
  %v632 = vadd.f32 %v630, %v631
  %v633 = vrot.slane %v632, 2
  %v634 = vadd.f32 %v632, %v633
  %v635 = vrot.slane %v634, 1
  %v636 = vadd.f32 %v634, %v635
  %v637 = vsel %vm507, %v587, 0.0
  %v638 = vrot.slane %v637, 4
  %v639 = vadd.f32 %v637, %v638
  %v640 = vrot.slane %v639, 2
  %v641 = vadd.f32 %v639, %v640
  %v642 = vrot.slane %v641, 1
  %v643 = vadd.f32 %v641, %v642
  %v644 = vrcp.pop %v594
  %v645 = vmul.f32 %v573, %v644
  %v646 = vrcp.pop %v601
  %v647 = vmul.f32 %v575, %v646
  %v648 = vrcp.pop %v608
  %v649 = vmul.f32 %v577, %v648
  %v650 = vrcp.pop %v615
  %v651 = vmul.f32 %v579, %v650
  %v652 = vrcp.pop %v622
  %v653 = vmul.f32 %v581, %v652
  %v654 = vrcp.pop %v629
  %v655 = vmul.f32 %v583, %v654
  %v656 = vrcp.pop %v636
  %v657 = vmul.f32 %v585, %v656
  %v658 = vrcp.pop %v643
  %v659 = vmul.f32 %v587, %v658
  %661 = vset.pattern.permute.xlu0 0
  %662 = vperm.xlu0 %661, %v492
  %v663 = vpop.permute.xlu0 %662
  %666 = vset.pattern.permute.xlu0 0
  %667 = vperm.xlu0 %666, %v494
  %v668 = vpop.permute.xlu0 %667
  %671 = vset.pattern.permute.xlu0 0
  %672 = vperm.xlu0 %671, %v496
  %v673 = vpop.permute.xlu0 %672
  %676 = vset.pattern.permute.xlu0 0
  %677 = vperm.xlu0 %676, %v498
  %v678 = vpop.permute.xlu0 %677
  %681 = vset.pattern.permute.xlu0 0
  %682 = vperm.xlu0 %681, %v500
  %v683 = vpop.permute.xlu0 %682
  %686 = vset.pattern.permute.xlu0 0
  %687 = vperm.xlu0 %686, %v502
  %v688 = vpop.permute.xlu0 %687
  %691 = vset.pattern.permute.xlu0 0
  %692 = vperm.xlu0 %691, %v504
  %v693 = vpop.permute.xlu0 %692
  %696 = vset.pattern.permute.xlu0 0
  %697 = vperm.xlu0 %696, %v506
  %v698 = vpop.permute.xlu0 %697
  %v700 = vmul.f32 %v663, %v66
  %v701 = vmul.f32 %v668, %v67
  %v702 = vmul.f32 %v673, %v68
  %v703 = vmul.f32 %v678, %v69
  %v704 = vmul.f32 %v683, %v70
  %v705 = vmul.f32 %v688, %v71
  %v706 = vmul.f32 %v693, %v72
  %v707 = vmul.f32 %v698, %v73
  %v708 = vsel %vm139, %v700, 0.0
  %v709 = vrot.slane %v708, 4
  %v710 = vadd.f32 %v708, %v709
  %v711 = vrot.slane %v710, 2
  %v712 = vadd.f32 %v710, %v711
  %v713 = vrot.slane %v712, 1
  %v714 = vadd.f32 %v712, %v713
  %v715 = vsel %vm139, %v701, 0.0
  %v716 = vrot.slane %v715, 4
  %v717 = vadd.f32 %v715, %v716
  %v718 = vrot.slane %v717, 2
  %v719 = vadd.f32 %v717, %v718
  %v720 = vrot.slane %v719, 1
  %v721 = vadd.f32 %v719, %v720
  %v722 = vsel %vm139, %v702, 0.0
  %v723 = vrot.slane %v722, 4
  %v724 = vadd.f32 %v722, %v723
  %v725 = vrot.slane %v724, 2
  %v726 = vadd.f32 %v724, %v725
  %v727 = vrot.slane %v726, 1
  %v728 = vadd.f32 %v726, %v727
  %v729 = vsel %vm139, %v703, 0.0
  %v730 = vrot.slane %v729, 4
  %v731 = vadd.f32 %v729, %v730
  %v732 = vrot.slane %v731, 2
  %v733 = vadd.f32 %v731, %v732
  %v734 = vrot.slane %v733, 1
  %v735 = vadd.f32 %v733, %v734
  %v736 = vsel %vm139, %v704, 0.0
  %v737 = vrot.slane %v736, 4
  %v738 = vadd.f32 %v736, %v737
  %v739 = vrot.slane %v738, 2
  %v740 = vadd.f32 %v738, %v739
  %v741 = vrot.slane %v740, 1
  %v742 = vadd.f32 %v740, %v741
  %v743 = vsel %vm139, %v705, 0.0
  %v744 = vrot.slane %v743, 4
  %v745 = vadd.f32 %v743, %v744
  %v746 = vrot.slane %v745, 2
  %v747 = vadd.f32 %v745, %v746
  %v748 = vrot.slane %v747, 1
  %v749 = vadd.f32 %v747, %v748
  %v750 = vsel %vm139, %v706, 0.0
  %v751 = vrot.slane %v750, 4
  %v752 = vadd.f32 %v750, %v751
  %v753 = vrot.slane %v752, 2
  %v754 = vadd.f32 %v752, %v753
  %v755 = vrot.slane %v754, 1
  %v756 = vadd.f32 %v754, %v755
  %v757 = vsel %vm139, %v707, 0.0
  %v758 = vrot.slane %v757, 4
  %v759 = vadd.f32 %v757, %v758
  %v760 = vrot.slane %v759, 2
  %v761 = vadd.f32 %v759, %v760
  %v762 = vrot.slane %v761, 1
  %v763 = vadd.f32 %v761, %v762
  %765 = vset.pattern.permute.xlu0 1
  %766 = vperm.xlu0 %765, %v645
  %v767 = vpop.permute.xlu0 %766
  %770 = vset.pattern.permute.xlu0 1
  %771 = vperm.xlu0 %770, %v647
  %v772 = vpop.permute.xlu0 %771
  %775 = vset.pattern.permute.xlu0 1
  %776 = vperm.xlu0 %775, %v649
  %v777 = vpop.permute.xlu0 %776
  %780 = vset.pattern.permute.xlu0 1
  %781 = vperm.xlu0 %780, %v651
  %v782 = vpop.permute.xlu0 %781
  %785 = vset.pattern.permute.xlu0 1
  %786 = vperm.xlu0 %785, %v653
  %v787 = vpop.permute.xlu0 %786
  %790 = vset.pattern.permute.xlu0 1
  %791 = vperm.xlu0 %790, %v655
  %v792 = vpop.permute.xlu0 %791
  %795 = vset.pattern.permute.xlu0 1
  %796 = vperm.xlu0 %795, %v657
  %v797 = vpop.permute.xlu0 %796
  %800 = vset.pattern.permute.xlu0 1
  %801 = vperm.xlu0 %800, %v659
  %v802 = vpop.permute.xlu0 %801
  %v804 = vmul.f32 %v767, %v50
  %v805 = vmul.f32 %v772, %v51
  %v806 = vmul.f32 %v777, %v52
  %v807 = vmul.f32 %v782, %v53
  %v808 = vmul.f32 %v787, %v54
  %v809 = vmul.f32 %v792, %v55
  %v810 = vmul.f32 %v797, %v56
  %v811 = vmul.f32 %v802, %v57
  %v812 = vsel %vm99, %v804, 0.0
  %v813 = vrot.slane %v812, 4
  %v814 = vadd.f32 %v812, %v813
  %v815 = vrot.slane %v814, 2
  %v816 = vadd.f32 %v814, %v815
  %v817 = vrot.slane %v816, 1
  %v818 = vadd.f32 %v816, %v817
  %v819 = vsel %vm99, %v805, 0.0
  %v820 = vrot.slane %v819, 4
  %v821 = vadd.f32 %v819, %v820
  %v822 = vrot.slane %v821, 2
  %v823 = vadd.f32 %v821, %v822
  %v824 = vrot.slane %v823, 1
  %v825 = vadd.f32 %v823, %v824
  %v826 = vsel %vm99, %v806, 0.0
  %v827 = vrot.slane %v826, 4
  %v828 = vadd.f32 %v826, %v827
  %v829 = vrot.slane %v828, 2
  %v830 = vadd.f32 %v828, %v829
  %v831 = vrot.slane %v830, 1
  %v832 = vadd.f32 %v830, %v831
  %v833 = vsel %vm99, %v807, 0.0
  %v834 = vrot.slane %v833, 4
  %v835 = vadd.f32 %v833, %v834
  %v836 = vrot.slane %v835, 2
  %v837 = vadd.f32 %v835, %v836
  %v838 = vrot.slane %v837, 1
  %v839 = vadd.f32 %v837, %v838
  %v840 = vsel %vm99, %v808, 0.0
  %v841 = vrot.slane %v840, 4
  %v842 = vadd.f32 %v840, %v841
  %v843 = vrot.slane %v842, 2
  %v844 = vadd.f32 %v842, %v843
  %v845 = vrot.slane %v844, 1
  %v846 = vadd.f32 %v844, %v845
  %v847 = vsel %vm99, %v809, 0.0
  %v848 = vrot.slane %v847, 4
  %v849 = vadd.f32 %v847, %v848
  %v850 = vrot.slane %v849, 2
  %v851 = vadd.f32 %v849, %v850
  %v852 = vrot.slane %v851, 1
  %v853 = vadd.f32 %v851, %v852
  %v854 = vsel %vm99, %v810, 0.0
  %v855 = vrot.slane %v854, 4
  %v856 = vadd.f32 %v854, %v855
  %v857 = vrot.slane %v856, 2
  %v858 = vadd.f32 %v856, %v857
  %v859 = vrot.slane %v858, 1
  %v860 = vadd.f32 %v858, %v859
  %v861 = vsel %vm99, %v811, 0.0
  %v862 = vrot.slane %v861, 4
  %v863 = vadd.f32 %v861, %v862
  %v864 = vrot.slane %v863, 2
  %v865 = vadd.f32 %v863, %v864
  %v866 = vrot.slane %v865, 1
  %v867 = vadd.f32 %v865, %v866
  %v868 = vsel %vm99, %v50, -inf
  %v869 = vrot.slane %v868, 4
  %v870 = vmax.f32 %v868, %v869
  %v871 = vrot.slane %v870, 2
  %v872 = vmax.f32 %v870, %v871
  %v873 = vrot.slane %v872, 1
  %v874 = vmax.f32 %v872, %v873
  %v875 = vsel %vm99, %v51, -inf
  %v876 = vrot.slane %v875, 4
  %v877 = vmax.f32 %v875, %v876
  %v878 = vrot.slane %v877, 2
  %v879 = vmax.f32 %v877, %v878
  %v880 = vrot.slane %v879, 1
  %v881 = vmax.f32 %v879, %v880
  %v882 = vsel %vm99, %v52, -inf
  %v883 = vrot.slane %v882, 4
  %v884 = vmax.f32 %v882, %v883
  %v885 = vrot.slane %v884, 2
  %v886 = vmax.f32 %v884, %v885
  %v887 = vrot.slane %v886, 1
  %v888 = vmax.f32 %v886, %v887
  %v889 = vsel %vm99, %v53, -inf
  %v890 = vrot.slane %v889, 4
  %v891 = vmax.f32 %v889, %v890
  %v892 = vrot.slane %v891, 2
  %v893 = vmax.f32 %v891, %v892
  %v894 = vrot.slane %v893, 1
  %v895 = vmax.f32 %v893, %v894
  %v896 = vsel %vm99, %v54, -inf
  %v897 = vrot.slane %v896, 4
  %v898 = vmax.f32 %v896, %v897
  %v899 = vrot.slane %v898, 2
  %v900 = vmax.f32 %v898, %v899
  %v901 = vrot.slane %v900, 1
  %v902 = vmax.f32 %v900, %v901
  %v903 = vsel %vm99, %v55, -inf
  %v904 = vrot.slane %v903, 4
  %v905 = vmax.f32 %v903, %v904
  %v906 = vrot.slane %v905, 2
  %v907 = vmax.f32 %v905, %v906
  %v908 = vrot.slane %v907, 1
  %v909 = vmax.f32 %v907, %v908
  %v910 = vsel %vm99, %v56, -inf
  %v911 = vrot.slane %v910, 4
  %v912 = vmax.f32 %v910, %v911
  %v913 = vrot.slane %v912, 2
  %v914 = vmax.f32 %v912, %v913
  %v915 = vrot.slane %v914, 1
  %v916 = vmax.f32 %v914, %v915
  %v917 = vsel %vm99, %v57, -inf
  %v918 = vrot.slane %v917, 4
  %v919 = vmax.f32 %v917, %v918
  %v920 = vrot.slane %v919, 2
  %v921 = vmax.f32 %v919, %v920
  %v922 = vrot.slane %v921, 1
  %v923 = vmax.f32 %v921, %v922
  %v924 = vld [vmem:[%s9] sm:$0xff]
  %v925 = vld [vmem:[%s9 + $0x8] sm:$0xff]
  %v926 = vld [vmem:[%s9 + $0x10] sm:$0xff]
  %v927 = vld [vmem:[%s9 + $0x18] sm:$0xff]
  %v928 = vld [vmem:[%s9 + $0x20] sm:$0xff]
  %v929 = vld [vmem:[%s9 + $0x28] sm:$0xff]
  %v930 = vld [vmem:[%s9 + $0x30] sm:$0xff]
  %v931 = vld [vmem:[%s9 + $0x38] sm:$0xff]
  %v932 = vld [vmem:[%s9 + $0x40] sm:$0xff]
  %v933 = vld [vmem:[%s9 + $0x48] sm:$0xff]
  %v934 = vld [vmem:[%s9 + $0x50] sm:$0xff]
  %v935 = vld [vmem:[%s9 + $0x58] sm:$0xff]
  %v936 = vld [vmem:[%s9 + $0x60] sm:$0xf]
  %v937 = vld [vmem:[%s10] sm:$0xff]
  %v938 = vld [vmem:[%s10 + $0x8] sm:$0xff]
  %v939 = vld [vmem:[%s10 + $0x10] sm:$0xff]
  %v940 = vld [vmem:[%s10 + $0x18] sm:$0xff]
  %vm949 = vcmask 1041409
  %v950 = vsel %vm949, %v825, %v818
  %vm951 = vcmask 1042434
  %v952 = vsel %vm951, %v832, %v950
  %vm953 = vcmask 1043459
  %v954 = vsel %vm953, %v839, %v952
  %vm955 = vcmask 1044484
  %v956 = vsel %vm955, %v846, %v954
  %vm957 = vcmask 1045509
  %v958 = vsel %vm957, %v853, %v956
  %vm959 = vcmask 1046534
  %v960 = vsel %vm959, %v860, %v958
  %vm961 = vcmask 1047559
  %v962 = vsel %vm961, %v867, %v960
  %v963 = vsel %vm99, %v962, 0
  %965 = vmatprep.subr.mxu0 0.0
  %966 = vmatpush1.msra.mxu0 0.0
  %967 = vmatprep.subr.mxu0 0.0
  %968 = vmatpush1.msra.mxu0 0.0
  %969 = vmatprep.subr.mxu0 0.0
  %970 = vmatpush1.msra.mxu0 0.0
  %971 = vmatprep.subr.mxu0 0.0
  %972 = vmatpush1.msra.mxu0 0.0
  %973 = vmatprep.subr.mxu0 0.0
  %974 = vmatpush1.msra.mxu0 0.0
  %975 = vmatprep.subr.mxu0 0.0
  %976 = vmatpush1.msra.mxu0 0.0
  %977 = vmatprep.subr.mxu0 0.0
  %978 = vmatpush1.msra.mxu0 0.0
  %979 = vmatprep.subr.mxu0 0.0
  %980 = vmatpush1.msra.mxu0 0.0
  %981 = vmatprep.subr.mxu0 0.0
  %982 = vmatpush1.msra.mxu0 0.0
  %983 = vmatprep.subr.mxu0 0.0
  %984 = vmatpush1.msra.mxu0 0.0
  %985 = vmatprep.subr.mxu0 0.0
  %986 = vmatpush1.msra.mxu0 0.0
  %987 = vmatprep.subr.mxu0 0.0
  %988 = vmatpush1.msra.mxu0 0.0
  %989 = vmatprep.subr.mxu0 0.0
  %990 = vmatpush1.msra.mxu0 %v940
  %991 = vmatprep.subr.mxu0 0.0
  %992 = vmatpush1.msra.mxu0 %v939
  %993 = vmatprep.subr.mxu0 0.0
  %994 = vmatpush1.msra.mxu0 %v938
  %995 = vmatprep.subr.mxu0 0.0
  %996 = vmatpush1.msra.mxu0 %v937
  %997 = vmatprep.subr.mxu0 0.0
  %998 = vmatpush2.msra.mxu0 0.0
  %999 = vmatprep.subr.mxu0 0.0
  %1000 = vmatpush2.msra.mxu0 0.0
  %1001 = vmatprep.subr.mxu0 0.0
  %1002 = vmatpush2.msra.mxu0 0.0
  %1003 = vmatprep.subr.mxu0 0.0
  %1004 = vmatpush2.msra.mxu0 0.0
  %1005 = vmatprep.subr.mxu0 0.0
  %1006 = vmatpush2.msra.mxu0 0.0
  %1007 = vmatprep.subr.mxu0 0.0
  %1008 = vmatpush2.msra.mxu0 0.0
  %1009 = vmatprep.subr.mxu0 0.0
  %1010 = vmatpush2.msra.mxu0 0.0
  %1011 = vmatprep.subr.mxu0 0.0
  %1012 = vmatpush2.msra.mxu0 0.0
  %1013 = vmatprep.subr.mxu0 0.0
  %1014 = vmatpush2.msra.mxu0 0.0
  %1015 = vmatprep.subr.mxu0 0.0
  %1016 = vmatpush2.msra.mxu0 0.0
  %1017 = vmatprep.subr.mxu0 0.0
  %1018 = vmatpush2.msra.mxu0 0.0
  %1019 = vmatprep.subr.mxu0 0.0
  %1020 = vmatpush2.msra.mxu0 0.0
  %1021 = vmatprep.subr.mxu0 0.0
  %1022 = vmatpush2.msra.mxu0 0.0
  %1023 = vmatprep.subr.mxu0 0.0
  %1024 = vmatpush2.msra.mxu0 0.0
  %1025 = vmatprep.subr.mxu0 0.0
  %1026 = vmatpush2.msra.mxu0 0.0
  %1027 = vmatprep.subr.mxu0 0.0
  %1028 = vmatpush2.msra.mxu0 0.0
  %1029 = vmatprep.mubr.f32.mxu0 0.0
  %1030 = vmatmul.mubr.f32.gmra.mxu0 %v963
  %v1031 = vpop.f32.mrf.mxu0
  %v1032 = vadd.f32 0.0, %v1031
  %v1033 = vpop.f32.mrf.mxu0
  %1034 = vdwg.mxu0
  %v1043 = vsel %vm949, %v721, %v714
  %v1044 = vsel %vm951, %v728, %v1043
  %v1045 = vsel %vm953, %v735, %v1044
  %v1046 = vsel %vm955, %v742, %v1045
  %v1047 = vsel %vm957, %v749, %v1046
  %v1048 = vsel %vm959, %v756, %v1047
  %v1049 = vsel %vm961, %v763, %v1048
  %v1050 = vsel %vm139, %v1049, 0
  %vm1052 = vcmask 1043456
  %v1054 = vsel %vm1052, %v936, 0
  %1056 = vmatprep.subr.mxu0 0.0
  %1057 = vmatpush1.msra.mxu0 0.0
  %1058 = vmatprep.subr.mxu0 0.0
  %1059 = vmatpush1.msra.mxu0 0.0
  %1060 = vmatprep.subr.mxu0 0.0
  %1061 = vmatpush1.msra.mxu0 0.0
  %1062 = vmatprep.subr.mxu0 0.0
  %1063 = vmatpush1.msra.mxu0 %v1054
  %1064 = vmatprep.subr.mxu0 0.0
  %1065 = vmatpush1.msra.mxu0 %v935
  %1066 = vmatprep.subr.mxu0 0.0
  %1067 = vmatpush1.msra.mxu0 %v934
  %1068 = vmatprep.subr.mxu0 0.0
  %1069 = vmatpush1.msra.mxu0 %v933
  %1070 = vmatprep.subr.mxu0 0.0
  %1071 = vmatpush1.msra.mxu0 %v932
  %1072 = vmatprep.subr.mxu0 0.0
  %1073 = vmatpush1.msra.mxu0 %v931
  %1074 = vmatprep.subr.mxu0 0.0
  %1075 = vmatpush1.msra.mxu0 %v930
  %1076 = vmatprep.subr.mxu0 0.0
  %1077 = vmatpush1.msra.mxu0 %v929
  %1078 = vmatprep.subr.mxu0 0.0
  %1079 = vmatpush1.msra.mxu0 %v928
  %1080 = vmatprep.subr.mxu0 0.0
  %1081 = vmatpush1.msra.mxu0 %v927
  %1082 = vmatprep.subr.mxu0 0.0
  %1083 = vmatpush1.msra.mxu0 %v926
  %1084 = vmatprep.subr.mxu0 0.0
  %1085 = vmatpush1.msra.mxu0 %v925
  %1086 = vmatprep.subr.mxu0 0.0
  %1087 = vmatpush1.msra.mxu0 %v924
  %1088 = vmatprep.subr.mxu0 0.0
  %1089 = vmatpush2.msra.mxu0 0.0
  %1090 = vmatprep.subr.mxu0 0.0
  %1091 = vmatpush2.msra.mxu0 0.0
  %1092 = vmatprep.subr.mxu0 0.0
  %1093 = vmatpush2.msra.mxu0 0.0
  %1094 = vmatprep.subr.mxu0 0.0
  %1095 = vmatpush2.msra.mxu0 0.0
  %1096 = vmatprep.subr.mxu0 0.0
  %1097 = vmatpush2.msra.mxu0 0.0
  %1098 = vmatprep.subr.mxu0 0.0
  %1099 = vmatpush2.msra.mxu0 0.0
  %1100 = vmatprep.subr.mxu0 0.0
  %1101 = vmatpush2.msra.mxu0 0.0
  %1102 = vmatprep.subr.mxu0 0.0
  %1103 = vmatpush2.msra.mxu0 0.0
  %1104 = vmatprep.subr.mxu0 0.0
  %1105 = vmatpush2.msra.mxu0 0.0
  %1106 = vmatprep.subr.mxu0 0.0
  %1107 = vmatpush2.msra.mxu0 0.0
  %1108 = vmatprep.subr.mxu0 0.0
  %1109 = vmatpush2.msra.mxu0 0.0
  %1110 = vmatprep.subr.mxu0 0.0
  %1111 = vmatpush2.msra.mxu0 0.0
  %1112 = vmatprep.subr.mxu0 0.0
  %1113 = vmatpush2.msra.mxu0 0.0
  %1114 = vmatprep.subr.mxu0 0.0
  %1115 = vmatpush2.msra.mxu0 0.0
  %1116 = vmatprep.subr.mxu0 0.0
  %1117 = vmatpush2.msra.mxu0 0.0
  %1118 = vmatprep.subr.mxu0 0.0
  %1119 = vmatpush2.msra.mxu0 0.0
  %1120 = vmatprep.mubr.f32.mxu0 0.0
  %1121 = vmatmul.mubr.f32.gmra.mxu0 %v1050
  %v1122 = vpop.f32.mrf.mxu0
  %v1123 = vadd.f32 %v1032, %v1122
  %v1124 = vpop.f32.mrf.mxu0
  %1125 = vdwg.mxu0
  %v1126 = vld [vmem:[%s11] sm:$0xff]
  %v1127 = vld [vmem:[%s11 + $0x8] sm:$0xff]
  %v1128 = vld [vmem:[%s11 + $0x10] sm:$0xff]
  %v1129 = vld [vmem:[%s11 + $0x18] sm:$0xff]
  %v1138 = vsel %vm949, %v881, %v874
  %v1139 = vsel %vm951, %v888, %v1138
  %v1140 = vsel %vm953, %v895, %v1139
  %v1141 = vsel %vm955, %v902, %v1140
  %v1142 = vsel %vm957, %v909, %v1141
  %v1143 = vsel %vm959, %v916, %v1142
  %v1144 = vsel %vm961, %v923, %v1143
  %v1145 = vsel %vm99, %v1144, 0
  %1147 = vmatprep.subr.mxu0 0.0
  %1148 = vmatpush1.msra.mxu0 0.0
  %1149 = vmatprep.subr.mxu0 0.0
  %1150 = vmatpush1.msra.mxu0 0.0
  %1151 = vmatprep.subr.mxu0 0.0
  %1152 = vmatpush1.msra.mxu0 0.0
  %1153 = vmatprep.subr.mxu0 0.0
  %1154 = vmatpush1.msra.mxu0 0.0
  %1155 = vmatprep.subr.mxu0 0.0
  %1156 = vmatpush1.msra.mxu0 0.0
  %1157 = vmatprep.subr.mxu0 0.0
  %1158 = vmatpush1.msra.mxu0 0.0
  %1159 = vmatprep.subr.mxu0 0.0
  %1160 = vmatpush1.msra.mxu0 0.0
  %1161 = vmatprep.subr.mxu0 0.0
  %1162 = vmatpush1.msra.mxu0 0.0
  %1163 = vmatprep.subr.mxu0 0.0
  %1164 = vmatpush1.msra.mxu0 0.0
  %1165 = vmatprep.subr.mxu0 0.0
  %1166 = vmatpush1.msra.mxu0 0.0
  %1167 = vmatprep.subr.mxu0 0.0
  %1168 = vmatpush1.msra.mxu0 0.0
  %1169 = vmatprep.subr.mxu0 0.0
  %1170 = vmatpush1.msra.mxu0 0.0
  %1171 = vmatprep.subr.mxu0 0.0
  %1172 = vmatpush1.msra.mxu0 %v1129
  %1173 = vmatprep.subr.mxu0 0.0
  %1174 = vmatpush1.msra.mxu0 %v1128
  %1175 = vmatprep.subr.mxu0 0.0
  %1176 = vmatpush1.msra.mxu0 %v1127
  %1177 = vmatprep.subr.mxu0 0.0
  %1178 = vmatpush1.msra.mxu0 %v1126
  %1179 = vmatprep.subr.mxu0 0.0
  %1180 = vmatpush2.msra.mxu0 0.0
  %1181 = vmatprep.subr.mxu0 0.0
  %1182 = vmatpush2.msra.mxu0 0.0
  %1183 = vmatprep.subr.mxu0 0.0
  %1184 = vmatpush2.msra.mxu0 0.0
  %1185 = vmatprep.subr.mxu0 0.0
  %1186 = vmatpush2.msra.mxu0 0.0
  %1187 = vmatprep.subr.mxu0 0.0
  %1188 = vmatpush2.msra.mxu0 0.0
  %1189 = vmatprep.subr.mxu0 0.0
  %1190 = vmatpush2.msra.mxu0 0.0
  %1191 = vmatprep.subr.mxu0 0.0
  %1192 = vmatpush2.msra.mxu0 0.0
  %1193 = vmatprep.subr.mxu0 0.0
  %1194 = vmatpush2.msra.mxu0 0.0
  %1195 = vmatprep.subr.mxu0 0.0
  %1196 = vmatpush2.msra.mxu0 0.0
  %1197 = vmatprep.subr.mxu0 0.0
  %1198 = vmatpush2.msra.mxu0 0.0
  %1199 = vmatprep.subr.mxu0 0.0
  %1200 = vmatpush2.msra.mxu0 0.0
  %1201 = vmatprep.subr.mxu0 0.0
  %1202 = vmatpush2.msra.mxu0 0.0
  %1203 = vmatprep.subr.mxu0 0.0
  %1204 = vmatpush2.msra.mxu0 0.0
  %1205 = vmatprep.subr.mxu0 0.0
  %1206 = vmatpush2.msra.mxu0 0.0
  %1207 = vmatprep.subr.mxu0 0.0
  %1208 = vmatpush2.msra.mxu0 0.0
  %1209 = vmatprep.subr.mxu0 0.0
  %1210 = vmatpush2.msra.mxu0 0.0
  %1211 = vmatprep.mubr.f32.mxu0 0.0
  %1212 = vmatmul.mubr.f32.gmra.mxu0 %v1145
  %v1213 = vpop.f32.mrf.mxu0
  %v1214 = vadd.f32 0.0, %v1213
  %v1215 = vpop.f32.mrf.mxu0
  %1216 = vdwg.mxu0
  %v1217 = vadd.f32 %v1123, %v1214
  %v1218 = vld [vmem:[%s12] sm:$0x1]
  %v1220 = vlaneseq
  %v1221 = vshrl.u32 %v1220, 7
  %v1222 = vsub.s32 0, %v1221
  %v1223 = vrot.slane %v1218, %v1222
  %v1225 = vadd.f32 %v1217, %v1223
  %v1226 = vtanh.pop %v1225
  %v1227 = vld [vmem:[%s13] sm:$0xff]
  %v1228 = vld [vmem:[%s13 + $0x8] sm:$0xff]
  %v1229 = vld [vmem:[%s13 + $0x10] sm:$0xff]
  %v1230 = vld [vmem:[%s13 + $0x18] sm:$0xff]
  %v1231 = vld [vmem:[%s14] sm:$0x1]
  %v1233 = vlaneseq
  %v1234 = vshrl.u32 %v1233, 7
  %v1235 = vsub.s32 0, %v1234
  %v1236 = vrot.slane %v1231, %v1235
  %v1239 = vsel %vm99, %v1226, 0
  %1241 = vmatprep.subr.mxu0 0.0
  %1242 = vmatpush1.msra.mxu0 0.0
  %1243 = vmatprep.subr.mxu0 0.0
  %1244 = vmatpush1.msra.mxu0 0.0
  %1245 = vmatprep.subr.mxu0 0.0
  %1246 = vmatpush1.msra.mxu0 0.0
  %1247 = vmatprep.subr.mxu0 0.0
  %1248 = vmatpush1.msra.mxu0 0.0
  %1249 = vmatprep.subr.mxu0 0.0
  %1250 = vmatpush1.msra.mxu0 0.0
  %1251 = vmatprep.subr.mxu0 0.0
  %1252 = vmatpush1.msra.mxu0 0.0
  %1253 = vmatprep.subr.mxu0 0.0
  %1254 = vmatpush1.msra.mxu0 0.0
  %1255 = vmatprep.subr.mxu0 0.0
  %1256 = vmatpush1.msra.mxu0 0.0
  %1257 = vmatprep.subr.mxu0 0.0
  %1258 = vmatpush1.msra.mxu0 0.0
  %1259 = vmatprep.subr.mxu0 0.0
  %1260 = vmatpush1.msra.mxu0 0.0
  %1261 = vmatprep.subr.mxu0 0.0
  %1262 = vmatpush1.msra.mxu0 0.0
  %1263 = vmatprep.subr.mxu0 0.0
  %1264 = vmatpush1.msra.mxu0 0.0
  %1265 = vmatprep.subr.mxu0 0.0
  %1266 = vmatpush1.msra.mxu0 %v1230
  %1267 = vmatprep.subr.mxu0 0.0
  %1268 = vmatpush1.msra.mxu0 %v1229
  %1269 = vmatprep.subr.mxu0 0.0
  %1270 = vmatpush1.msra.mxu0 %v1228
  %1271 = vmatprep.subr.mxu0 0.0
  %1272 = vmatpush1.msra.mxu0 %v1227
  %1273 = vmatprep.subr.mxu0 0.0
  %1274 = vmatpush2.msra.mxu0 0.0
  %1275 = vmatprep.subr.mxu0 0.0
  %1276 = vmatpush2.msra.mxu0 0.0
  %1277 = vmatprep.subr.mxu0 0.0
  %1278 = vmatpush2.msra.mxu0 0.0
  %1279 = vmatprep.subr.mxu0 0.0
  %1280 = vmatpush2.msra.mxu0 0.0
  %1281 = vmatprep.subr.mxu0 0.0
  %1282 = vmatpush2.msra.mxu0 0.0
  %1283 = vmatprep.subr.mxu0 0.0
  %1284 = vmatpush2.msra.mxu0 0.0
  %1285 = vmatprep.subr.mxu0 0.0
  %1286 = vmatpush2.msra.mxu0 0.0
  %1287 = vmatprep.subr.mxu0 0.0
  %1288 = vmatpush2.msra.mxu0 0.0
  %1289 = vmatprep.subr.mxu0 0.0
  %1290 = vmatpush2.msra.mxu0 0.0
  %1291 = vmatprep.subr.mxu0 0.0
  %1292 = vmatpush2.msra.mxu0 0.0
  %1293 = vmatprep.subr.mxu0 0.0
  %1294 = vmatpush2.msra.mxu0 0.0
  %1295 = vmatprep.subr.mxu0 0.0
  %1296 = vmatpush2.msra.mxu0 0.0
  %1297 = vmatprep.subr.mxu0 0.0
  %1298 = vmatpush2.msra.mxu0 0.0
  %1299 = vmatprep.subr.mxu0 0.0
  %1300 = vmatpush2.msra.mxu0 0.0
  %1301 = vmatprep.subr.mxu0 0.0
  %1302 = vmatpush2.msra.mxu0 0.0
  %1303 = vmatprep.subr.mxu0 0.0
  %1304 = vmatpush2.msra.mxu0 0.0
  %1305 = vmatprep.mubr.f32.mxu0 0.0
  %1306 = vmatmul.mubr.f32.gmra.mxu0 %v1239
  %v1307 = vpop.f32.mrf.mxu0
  %v1308 = vadd.f32 %v1236, %v1307
  %v1309 = vpop.f32.mrf.mxu0
  %1310 = vdwg.mxu0
  %vm1311 = vcmask 23552
  %1312 = vst.msk [vmem:[%s15] sm:$0xff] %vm1311, %v1308
  // Predicated region
  $region62: #{primary_imn_forward.1} parent=0 // pred_check
    _
  $region63: #{primary_imn_forward.1} parent=0 // pred_check_branch
    %1314 = sbr.rel (0) target = $region65
  $region64: #{primary_imn_forward.1} parent=0 // pred_region
    _
  $region65: #{primary_imn_forward.1} parent=0 // pred_fallthru
    _
  // Predicated region
  $region66: #{primary_imn_forward.1} parent=0 // pred_check
    _
  $region67: #{primary_imn_forward.1} parent=0 // pred_check_branch
    %1316 = sbr.rel (0) target = $region69
  $region68: #{primary_imn_forward.1} parent=0 // pred_region
    _
  $region69: #{primary_imn_forward.1} parent=0 // pred_fallthru
    _

</llo_original>
